<compile_context>
chip_gen: v6e
topology: v6e:2x2x1
jax: 0.10.0
libtpu: 0.0.40
codegen_flags: <defaults>
</compile_context>

<pallas_src>
import functools
import math

import jax
import jax.numpy as jnp
import numpy as np
from jax.experimental import pallas as pl
from jax.experimental.pallas import tpu as pltpu

SCALES = (4, 8, 16, 32)
NEG_SLOPE = 0.2
_STAGE_PAD = 8          # stage rows padded to one full sublane group


def _leaky(x):
    return jnp.where(x >= 0.0, x, NEG_SLOPE * x)


def _pyramid_kernel(wm_ref, wsb_ref, bias_ref, code_ref, x_ref, o_ref, *,
                    scales, width, tile_rows):
    """One grid step = one image x one `tile_rows`-row H-tile.

    Layout is lane-dense: image row r of the tile occupies lanes
    [r*width, (r+1)*width).  Pooling + nearest upsampling is a lane-space
    butterfly (pltpu.roll + select + add); no per-row slices / concats.
    """
    L = tile_rows * width
    f32 = jnp.float32

    x = x_ref[0]                                           # (C, L) native dtype
    # Merged channel mix: rows [0, S) = stage 1x1 convs, rows [S, 8) = zero pad,
    # rows [8, 8+O) = bottleneck weights for the identity (x) channels.
    zall = jnp.dot(wm_ref[...], x, preferred_element_type=f32)   # (8+O, L) f32

    t = zall[:_STAGE_PAD, :]                               # (8, L) stage maps
    acc = zall[_STAGE_PAD:, :] + bias_ref[...]             # (O, L) + (O,1) bias

    wsb = wsb_ref[...]                                     # (O, S) f32, w/sc^2
    code = code_ref[...]                                   # (1, L) int32: w | (h<<16)

    # Probe pltpu.roll's rotation convention once (1x128 roll + one compare) so
    # the butterfly below is correct under either direction convention.
    iota = jax.lax.broadcasted_iota(jnp.int32, (1, 128), 1).astype(f32)
    probe = pltpu.roll(iota, 1, axis=1)
    np_conv = (probe[:, 0:1] > 64.0).astype(jnp.int32)     # 1 iff numpy-style roll
    np_conv = jnp.broadcast_to(np_conv, (1, L))

    def butterfly(v, dist, bit):
        # v[l] += v[partner], partner at +dist where bit==0, -dist where bit==1.
        # Groups are aligned, so the wrapped lanes are never the selected ones.
        r_a = pltpu.roll(v, dist, axis=1)                  # numpy conv: from l-dist
        r_b = pltpu.roll(v, L - dist, axis=1)              # numpy conv: from l+dist
        take_b = bit != np_conv                            # from l+dist (either conv)
        return v + jnp.where(take_b, r_b, r_a)

    # Progressive group sums: after bit-level k every lane holds the sum of its
    # aligned 2^(k+1) x 2^(k+1) block == the avg-pooled AND nearest-upsampled
    # stage map (the 1/sc^2 factor lives in wsb).
    by_level = {}
    for i, sc in enumerate(scales):
        by_level.setdefault(sc.bit_length() - 1, []).append(i)
    for k in range(max(by_level)):
        w_bit = (code >> k) & 1
        t = butterfly(t, 1 << k, w_bit)                    # W direction
        h_bit = (code >> (16 + k)) & 1
        t = butterfly(t, (1 << k) * width, h_bit)          # H direction
        for i in by_level.get(k + 1, ()):                  # scales == 2**(k+1)
            stage = _leaky(t[i:i + 1, :])                  # (1, L)
            acc = acc + wsb[:, i:i + 1] * stage            # VPU rank-1 FMA

    o_ref[0] = _leaky(acc).astype(o_ref.dtype)


def _vmem_budgets():
    """(per-step block byte budget, scoped vmem limit), tuned per generation."""
    cap = 0
    try:
        cap = int(getattr(pltpu.get_tpu_info(), "vmem_capacity_bytes", 0))
    except Exception:
        cap = 0
    if cap >= 100 * 1024 * 1024:            # v5e / v6e: 128 MiB physical VMEM
        return 12 * 1024 * 1024, 64 * 1024 * 1024
    # v7x (64 MiB per TensorCore) or unknown backend: stay conservative.
    return 6 * 1024 * 1024, 48 * 1024 * 1024


def _choose_tile_rows(n, c, h, w, o, scales, itemsize, budget):
    """Largest scale-aligned divisor of H whose per-step working set fits."""
    base = math.lcm(*scales)
    cands = [d for d in range(base, h + 1, base) if h % d == 0]
    if not cands:
        cands = [base]

    def step_bytes(th):
        lanes = th * w
        io = 2 * (c + o) * itemsize                 # double-buffered in + out
        tmp = 4 * (4 * _STAGE_PAD + 2 * o + 8)      # f32 zall/t/acc/roll temps
        return lanes * (io + tmp)

    th = cands[0]
    for d in cands:
        if d <= 512 and step_bytes(d) <= budget:
            th = max(th, d)
    # Keep >= 2 grid steps when possible so both v7x TensorCores get work.
    if n * (h // th) < 2:
        for d in reversed(cands):
            if h // d >= 2 and step_bytes(d) <= budget:
                th = d
                break
    return th


def pyramid_pooling(x, w_stage, w_bottleneck, b_bottleneck, scales=SCALES):
    n, c, h, w = x.shape
    s = len(scales)
    o = w_bottleneck.shape[0]
    assert w_stage.shape == (s, c)
    assert w_bottleneck.shape == (o, s + c)
    assert b_bottleneck.shape == (o,)
    assert s <= _STAGE_PAD, "at most 8 pyramid stages supported"
    for sc in scales:
        assert sc >= 2 and (sc & (sc - 1)) == 0, "scales must be powers of two"
        # TODO(synk): AvgPool2d floor-cropping + nearest resize for non-divisible
        # spatial dims is not modeled; exact divisibility is required.
        assert h % sc == 0 and w % sc == 0, "H, W must be divisible by every scale"

    budget, vmem_limit = _vmem_budgets()
    itemsize = jnp.dtype(x.dtype).itemsize
    th = _choose_tile_rows(n, c, h, w, o, scales, itemsize, budget)
    lanes = th * w
    grid = (n, h // th)

    f32 = jnp.float32
    # Merged channel-mix weight (stage convs + bottleneck identity part).
    wm = jnp.concatenate(
        [w_stage.astype(f32),
         jnp.zeros((_STAGE_PAD - s, c), f32),
         w_bottleneck[:, s:].astype(f32)], axis=0).astype(x.dtype)   # (8+O, C)
    # Per-stage bottleneck columns with the 1/sc^2 pooling factor folded in.
    inv_sq = jnp.asarray([1.0 / float(sc * sc) for sc in scales], f32)
    wsb = w_bottleneck[:, :s].astype(f32) * inv_sq[None, :]          # (O, S)
    bias = b_bottleneck.reshape(o, 1).astype(f32)                    # (O, 1)
    # Per-lane (w | h<<16) coordinates of the lane-dense tile layout.
    lane = np.arange(lanes)
    code_np = ((lane % w) | ((lane // w) << 16)).astype(np.int32).reshape(1, lanes)
    code = jnp.asarray(code_np)

    x_flat = x.reshape(n, c, h * w)          # free view: lane-dense spatial

    kernel = functools.partial(_pyramid_kernel,
                               scales=tuple(int(sc) for sc in scales),
                               width=w, tile_rows=th)

    def const_spec(shape):
        return pl.BlockSpec(shape, lambda i, t: (0,) * len(shape))

    out_flat = pl.pallas_call(
        kernel,
        out_shape=jax.ShapeDtypeStruct((n, o, h * w), x.dtype),
        grid=grid,
        in_specs=[
            const_spec((_STAGE_PAD + o, c)),        # merged channel-mix weight
            const_spec((o, s)),                      # per-stage bottleneck cols
            const_spec((o, 1)),                      # bias
            const_spec((1, lanes)),                  # lane coordinate codes
            pl.BlockSpec((1, c, lanes), lambda i, t: (i, 0, t)),
        ],
        out_specs=pl.BlockSpec((1, o, lanes), lambda i, t: (i, 0, t)),
        compiler_params=pltpu.CompilerParams(
            dimension_semantics=("parallel", "parallel"),
            vmem_limit_bytes=vmem_limit,
        ),
    )(wm, wsb, bias, code, x_flat)

    return out_flat.reshape(n, o, h, w)


if __name__ == "__main__":
    key = jax.random.PRNGKey(0)
    k1, k2, k3, k4 = jax.random.split(key, 4)

    # Spatial dims must be divisible by max(scale)=32.
    N, C, H, W, O = 2, 4, 32, 32, 8
    S = len(SCALES)

    x = jax.random.normal(k1, (N, C, H, W), jnp.float32)
    # Stage convs: Conv2d(C, ct_channels=1, kernel=1, bias=False) -> (S, C)
    w_stage = 0.1 * jax.random.normal(k2, (S, C), jnp.float32)
    # Bottleneck: Conv2d(C + S, O, kernel=1) -> weight (O, S + C), bias (O,)
    # (input-channel order matches torch.cat: [stages..., feats])
    w_bott = 0.1 * jax.random.normal(k3, (O, S + C), jnp.float32)
    b_bott = 0.1 * jax.random.normal(k4, (O,), jnp.float32)

    out = pyramid_pooling(x, w_stage, w_bott, b_bott)
    out = jax.block_until_ready(out)

    # Pure-JAX reference reproducing the PyTorch forward exactly.
    def ref_forward(x):
        priors = []
        for s_idx, sc in enumerate(SCALES):
            pooled = x.reshape(N, C, H // sc, sc, W // sc, sc).mean(axis=(3, 5))
            conv = jnp.einsum('c,nchw->nhw', w_stage[s_idx], pooled)
            act = jnp.where(conv >= 0, conv, NEG_SLOPE * conv)
            up = jnp.repeat(jnp.repeat(act, sc, axis=1), sc, axis=2)
            priors.append(up[:, None])
        priors.append(x)
        cat = jnp.concatenate(priors, axis=1)
        y = jnp.einsum('oc,nchw->nohw', w_bott, cat) + b_bott[None, :, None, None]
        return jnp.where(y >= 0, y, NEG_SLOPE * y)

    ref = ref_forward(x)
    assert out.shape == (N, O, H, W)
    err = float(jnp.max(jnp.abs(out - ref)))
    assert jnp.allclose(out, ref, atol=1e-4, rtol=1e-4), err
    print("KERNEL_OK")
</pallas_src>

<mosaic_0001>
module attributes {stable_mosaic.version = 11 : i64} {
  func.func @_pyramid_kernel(%arg0: i32, %arg1: i32, %arg2: memref<16x4xf32, #tpu.memory_space<vmem>>, %arg3: memref<8x4xf32, #tpu.memory_space<vmem>>, %arg4: memref<8x1xf32, #tpu.memory_space<vmem>>, %arg5: memref<1x1024xi32, #tpu.memory_space<vmem>>, %arg6: memref<1x4x1024xf32, #tpu.memory_space<vmem>>, %arg7: memref<1x8x1024xf32, #tpu.memory_space<vmem>>) attributes {dimension_semantics = [#tpu.dimension_semantics<parallel>, #tpu.dimension_semantics<parallel>], iteration_bounds = array<i64: 2, 1>, scalar_prefetch = 0 : i64, scratch_operands = 0 : i64, tpu.core_type = #tpu.core_type<tc>, window_params = [{pipeline_mode = #tpu.pipeline_mode<synchronous>, transform_indices = @transform_0, window_bounds = array<i64: 16, 4>}, {pipeline_mode = #tpu.pipeline_mode<synchronous>, transform_indices = @transform_1, window_bounds = array<i64: 8, 4>}, {pipeline_mode = #tpu.pipeline_mode<synchronous>, transform_indices = @transform_2, window_bounds = array<i64: 8, 1>}, {pipeline_mode = #tpu.pipeline_mode<synchronous>, transform_indices = @transform_3, window_bounds = array<i64: 1, 1024>}, {transform_indices = @transform_4, window_bounds = array<i64: 1, 4, 1024>}, {transform_indices = @transform_5, window_bounds = array<i64: 1, 8, 1024>}]} {
    %c0 = arith.constant 0 : index
    %c0_0 = arith.constant 0 : index
    %c0_1 = arith.constant 0 : index
    %0 = vector.load %arg6[%c0, %c0_0, %c0_1] : memref<1x4x1024xf32, #tpu.memory_space<vmem>>, vector<1x4x1024xf32>
    %1 = vector.shape_cast %0 : vector<1x4x1024xf32> to vector<4x1024xf32>
    %c0_2 = arith.constant 0 : index
    %c0_3 = arith.constant 0 : index
    %2 = vector.load %arg2[%c0_2, %c0_3] : memref<16x4xf32, #tpu.memory_space<vmem>>, vector<16x4xf32>
    %cst = arith.constant dense<0.000000e+00> : vector<16x1024xf32>
    %3 = tpu.matmul %2, %1, %cst {dimension_numbers = #tpu.dot_dimension_numbers<[1], [0], [0], [1], [0, 0, 1, 1], [], []>} : vector<16x4xf32>, vector<4x1024xf32>, vector<16x1024xf32> -> vector<16x1024xf32>
    %4 = vector.extract_strided_slice %3 {offsets = [0, 0], sizes = [8, 1024], strides = [1, 1]} : vector<16x1024xf32> to vector<8x1024xf32>
    %5 = vector.extract_strided_slice %3 {offsets = [8, 0], sizes = [8, 1024], strides = [1, 1]} : vector<16x1024xf32> to vector<8x1024xf32>
    %c0_4 = arith.constant 0 : index
    %c0_5 = arith.constant 0 : index
    %6 = vector.load %arg4[%c0_4, %c0_5] : memref<8x1xf32, #tpu.memory_space<vmem>>, vector<8x1xf32>
    %7 = vector.broadcast %6 : vector<8x1xf32> to vector<8x1024xf32>
    %8 = arith.addf %5, %7 : vector<8x1024xf32>
    %c0_6 = arith.constant 0 : index
    %c0_7 = arith.constant 0 : index
    %9 = vector.load %arg3[%c0_6, %c0_7] : memref<8x4xf32, #tpu.memory_space<vmem>>, vector<8x4xf32>
    %c0_8 = arith.constant 0 : index
    %c0_9 = arith.constant 0 : index
    %10 = vector.load %arg5[%c0_8, %c0_9] : memref<1x1024xi32, #tpu.memory_space<vmem>>, vector<1x1024xi32>
    %11 = tpu.iota {dimensions = array<i32: 1>} : vector<1x128xi32>
    %12 = arith.sitofp %11 : vector<1x128xi32> to vector<1x128xf32>
    %c1_i32 = arith.constant 1 : i32
    %13 = tpu.dynamic_rotate %12 by %c1_i32 dim 1 : vector<1x128xf32>, i32 -> vector<1x128xf32>
    %14 = vector.extract_strided_slice %13 {offsets = [0, 0], sizes = [1, 1], strides = [1, 1]} : vector<1x128xf32> to vector<1x1xf32>
    %cst_10 = arith.constant 6.400000e+01 : f32
    %15 = vector.broadcast %cst_10 : f32 to vector<1x1xf32>
    %16 = arith.cmpf ogt, %14, %15 : vector<1x1xf32>
    %17 = arith.extui %16 : vector<1x1xi1> to vector<1x1xi32>
    %18 = vector.shape_cast %17 : vector<1x1xi32> to vector<1x1xi32>
    %19 = vector.broadcast %18 : vector<1x1xi32> to vector<1x1024xi32>
    %c0_i32 = arith.constant 0 : i32
    %20 = vector.broadcast %c0_i32 : i32 to vector<1x1024xi32>
    %21 = arith.shrsi %10, %20 : vector<1x1024xi32>
    %c1_i32_11 = arith.constant 1 : i32
    %22 = vector.broadcast %c1_i32_11 : i32 to vector<1x1024xi32>
    %23 = arith.andi %21, %22 : vector<1x1024xi32>
    %c1_i32_12 = arith.constant 1 : i32
    %24 = tpu.dynamic_rotate %4 by %c1_i32_12 dim 1 : vector<8x1024xf32>, i32 -> vector<8x1024xf32>
    %c1023_i32 = arith.constant 1023 : i32
    %25 = tpu.dynamic_rotate %4 by %c1023_i32 dim 1 : vector<8x1024xf32>, i32 -> vector<8x1024xf32>
    %26 = arith.cmpi ne, %23, %19 : vector<1x1024xi32>
    %27 = vector.shape_cast %26 : vector<1x1024xi1> to vector<1x1024xi1>
    %28 = vector.broadcast %27 : vector<1x1024xi1> to vector<8x1024xi1>
    %29 = arith.select %28, %25, %24 : vector<8x1024xi1>, vector<8x1024xf32>
    %30 = arith.addf %4, %29 : vector<8x1024xf32>
    %c16_i32 = arith.constant 16 : i32
    %31 = vector.broadcast %c16_i32 : i32 to vector<1x1024xi32>
    %32 = arith.shrsi %10, %31 : vector<1x1024xi32>
    %c1_i32_13 = arith.constant 1 : i32
    %33 = vector.broadcast %c1_i32_13 : i32 to vector<1x1024xi32>
    %34 = arith.andi %32, %33 : vector<1x1024xi32>
    %c32_i32 = arith.constant 32 : i32
    %35 = tpu.dynamic_rotate %30 by %c32_i32 dim 1 : vector<8x1024xf32>, i32 -> vector<8x1024xf32>
    %c992_i32 = arith.constant 992 : i32
    %36 = tpu.dynamic_rotate %30 by %c992_i32 dim 1 : vector<8x1024xf32>, i32 -> vector<8x1024xf32>
    %37 = arith.cmpi ne, %34, %19 : vector<1x1024xi32>
    %38 = vector.shape_cast %37 : vector<1x1024xi1> to vector<1x1024xi1>
    %39 = vector.broadcast %38 : vector<1x1024xi1> to vector<8x1024xi1>
    %40 = arith.select %39, %36, %35 : vector<8x1024xi1>, vector<8x1024xf32>
    %41 = arith.addf %30, %40 : vector<8x1024xf32>
    %c1_i32_14 = arith.constant 1 : i32
    %42 = vector.broadcast %c1_i32_14 : i32 to vector<1x1024xi32>
    %43 = arith.shrsi %10, %42 : vector<1x1024xi32>
    %c1_i32_15 = arith.constant 1 : i32
    %44 = vector.broadcast %c1_i32_15 : i32 to vector<1x1024xi32>
    %45 = arith.andi %43, %44 : vector<1x1024xi32>
    %c2_i32 = arith.constant 2 : i32
    %46 = tpu.dynamic_rotate %41 by %c2_i32 dim 1 : vector<8x1024xf32>, i32 -> vector<8x1024xf32>
    %c1022_i32 = arith.constant 1022 : i32
    %47 = tpu.dynamic_rotate %41 by %c1022_i32 dim 1 : vector<8x1024xf32>, i32 -> vector<8x1024xf32>
    %48 = arith.cmpi ne, %45, %19 : vector<1x1024xi32>
    %49 = vector.shape_cast %48 : vector<1x1024xi1> to vector<1x1024xi1>
    %50 = vector.broadcast %49 : vector<1x1024xi1> to vector<8x1024xi1>
    %51 = arith.select %50, %47, %46 : vector<8x1024xi1>, vector<8x1024xf32>
    %52 = arith.addf %41, %51 : vector<8x1024xf32>
    %c17_i32 = arith.constant 17 : i32
    %53 = vector.broadcast %c17_i32 : i32 to vector<1x1024xi32>
    %54 = arith.shrsi %10, %53 : vector<1x1024xi32>
    %c1_i32_16 = arith.constant 1 : i32
    %55 = vector.broadcast %c1_i32_16 : i32 to vector<1x1024xi32>
    %56 = arith.andi %54, %55 : vector<1x1024xi32>
    %c64_i32 = arith.constant 64 : i32
    %57 = tpu.dynamic_rotate %52 by %c64_i32 dim 1 : vector<8x1024xf32>, i32 -> vector<8x1024xf32>
    %c960_i32 = arith.constant 960 : i32
    %58 = tpu.dynamic_rotate %52 by %c960_i32 dim 1 : vector<8x1024xf32>, i32 -> vector<8x1024xf32>
    %59 = arith.cmpi ne, %56, %19 : vector<1x1024xi32>
    %60 = vector.shape_cast %59 : vector<1x1024xi1> to vector<1x1024xi1>
    %61 = vector.broadcast %60 : vector<1x1024xi1> to vector<8x1024xi1>
    %62 = arith.select %61, %58, %57 : vector<8x1024xi1>, vector<8x1024xf32>
    %63 = arith.addf %52, %62 : vector<8x1024xf32>
    %64 = vector.extract_strided_slice %63 {offsets = [0, 0], sizes = [1, 1024], strides = [1, 1]} : vector<8x1024xf32> to vector<1x1024xf32>
    %cst_17 = arith.constant 0.000000e+00 : f32
    %65 = vector.broadcast %cst_17 : f32 to vector<1x1024xf32>
    %66 = arith.cmpf oge, %64, %65 : vector<1x1024xf32>
    %cst_18 = arith.constant 2.000000e-01 : f32
    %67 = vector.broadcast %cst_18 : f32 to vector<1x1024xf32>
    %68 = arith.mulf %67, %64 : vector<1x1024xf32>
    %69 = arith.select %66, %64, %68 : vector<1x1024xi1>, vector<1x1024xf32>
    %70 = vector.extract_strided_slice %9 {offsets = [0, 0], sizes = [8, 1], strides = [1, 1]} : vector<8x4xf32> to vector<8x1xf32>
    %71 = vector.broadcast %70 : vector<8x1xf32> to vector<8x1024xf32>
    %72 = vector.broadcast %69 : vector<1x1024xf32> to vector<8x1024xf32>
    %73 = arith.mulf %71, %72 : vector<8x1024xf32>
    %74 = arith.addf %8, %73 : vector<8x1024xf32>
    %c2_i32_19 = arith.constant 2 : i32
    %75 = vector.broadcast %c2_i32_19 : i32 to vector<1x1024xi32>
    %76 = arith.shrsi %10, %75 : vector<1x1024xi32>
    %c1_i32_20 = arith.constant 1 : i32
    %77 = vector.broadcast %c1_i32_20 : i32 to vector<1x1024xi32>
    %78 = arith.andi %76, %77 : vector<1x1024xi32>
    %c4_i32 = arith.constant 4 : i32
    %79 = tpu.dynamic_rotate %63 by %c4_i32 dim 1 : vector<8x1024xf32>, i32 -> vector<8x1024xf32>
    %c1020_i32 = arith.constant 1020 : i32
    %80 = tpu.dynamic_rotate %63 by %c1020_i32 dim 1 : vector<8x1024xf32>, i32 -> vector<8x1024xf32>
    %81 = arith.cmpi ne, %78, %19 : vector<1x1024xi32>
    %82 = vector.shape_cast %81 : vector<1x1024xi1> to vector<1x1024xi1>
    %83 = vector.broadcast %82 : vector<1x1024xi1> to vector<8x1024xi1>
    %84 = arith.select %83, %80, %79 : vector<8x1024xi1>, vector<8x1024xf32>
    %85 = arith.addf %63, %84 : vector<8x1024xf32>
    %c18_i32 = arith.constant 18 : i32
    %86 = vector.broadcast %c18_i32 : i32 to vector<1x1024xi32>
    %87 = arith.shrsi %10, %86 : vector<1x1024xi32>
    %c1_i32_21 = arith.constant 1 : i32
    %88 = vector.broadcast %c1_i32_21 : i32 to vector<1x1024xi32>
    %89 = arith.andi %87, %88 : vector<1x1024xi32>
    %c128_i32 = arith.constant 128 : i32
    %90 = tpu.dynamic_rotate %85 by %c128_i32 dim 1 : vector<8x1024xf32>, i32 -> vector<8x1024xf32>
    %c896_i32 = arith.constant 896 : i32
    %91 = tpu.dynamic_rotate %85 by %c896_i32 dim 1 : vector<8x1024xf32>, i32 -> vector<8x1024xf32>
    %92 = arith.cmpi ne, %89, %19 : vector<1x1024xi32>
    %93 = vector.shape_cast %92 : vector<1x1024xi1> to vector<1x1024xi1>
    %94 = vector.broadcast %93 : vector<1x1024xi1> to vector<8x1024xi1>
    %95 = arith.select %94, %91, %90 : vector<8x1024xi1>, vector<8x1024xf32>
    %96 = arith.addf %85, %95 : vector<8x1024xf32>
    %97 = vector.extract_strided_slice %96 {offsets = [1, 0], sizes = [1, 1024], strides = [1, 1]} : vector<8x1024xf32> to vector<1x1024xf32>
    %cst_22 = arith.constant 0.000000e+00 : f32
    %98 = vector.broadcast %cst_22 : f32 to vector<1x1024xf32>
    %99 = arith.cmpf oge, %97, %98 : vector<1x1024xf32>
    %cst_23 = arith.constant 2.000000e-01 : f32
    %100 = vector.broadcast %cst_23 : f32 to vector<1x1024xf32>
    %101 = arith.mulf %100, %97 : vector<1x1024xf32>
    %102 = arith.select %99, %97, %101 : vector<1x1024xi1>, vector<1x1024xf32>
    %103 = vector.extract_strided_slice %9 {offsets = [0, 1], sizes = [8, 1], strides = [1, 1]} : vector<8x4xf32> to vector<8x1xf32>
    %104 = vector.broadcast %103 : vector<8x1xf32> to vector<8x1024xf32>
    %105 = vector.broadcast %102 : vector<1x1024xf32> to vector<8x1024xf32>
    %106 = arith.mulf %104, %105 : vector<8x1024xf32>
    %107 = arith.addf %74, %106 : vector<8x1024xf32>
    %c3_i32 = arith.constant 3 : i32
    %108 = vector.broadcast %c3_i32 : i32 to vector<1x1024xi32>
    %109 = arith.shrsi %10, %108 : vector<1x1024xi32>
    %c1_i32_24 = arith.constant 1 : i32
    %110 = vector.broadcast %c1_i32_24 : i32 to vector<1x1024xi32>
    %111 = arith.andi %109, %110 : vector<1x1024xi32>
    %c8_i32 = arith.constant 8 : i32
    %112 = tpu.dynamic_rotate %96 by %c8_i32 dim 1 : vector<8x1024xf32>, i32 -> vector<8x1024xf32>
    %c1016_i32 = arith.constant 1016 : i32
    %113 = tpu.dynamic_rotate %96 by %c1016_i32 dim 1 : vector<8x1024xf32>, i32 -> vector<8x1024xf32>
    %114 = arith.cmpi ne, %111, %19 : vector<1x1024xi32>
    %115 = vector.shape_cast %114 : vector<1x1024xi1> to vector<1x1024xi1>
    %116 = vector.broadcast %115 : vector<1x1024xi1> to vector<8x1024xi1>
    %117 = arith.select %116, %113, %112 : vector<8x1024xi1>, vector<8x1024xf32>
    %118 = arith.addf %96, %117 : vector<8x1024xf32>
    %c19_i32 = arith.constant 19 : i32
    %119 = vector.broadcast %c19_i32 : i32 to vector<1x1024xi32>
    %120 = arith.shrsi %10, %119 : vector<1x1024xi32>
    %c1_i32_25 = arith.constant 1 : i32
    %121 = vector.broadcast %c1_i32_25 : i32 to vector<1x1024xi32>
    %122 = arith.andi %120, %121 : vector<1x1024xi32>
    %c256_i32 = arith.constant 256 : i32
    %123 = tpu.dynamic_rotate %118 by %c256_i32 dim 1 : vector<8x1024xf32>, i32 -> vector<8x1024xf32>
    %c768_i32 = arith.constant 768 : i32
    %124 = tpu.dynamic_rotate %118 by %c768_i32 dim 1 : vector<8x1024xf32>, i32 -> vector<8x1024xf32>
    %125 = arith.cmpi ne, %122, %19 : vector<1x1024xi32>
    %126 = vector.shape_cast %125 : vector<1x1024xi1> to vector<1x1024xi1>
    %127 = vector.broadcast %126 : vector<1x1024xi1> to vector<8x1024xi1>
    %128 = arith.select %127, %124, %123 : vector<8x1024xi1>, vector<8x1024xf32>
    %129 = arith.addf %118, %128 : vector<8x1024xf32>
    %130 = vector.extract_strided_slice %129 {offsets = [2, 0], sizes = [1, 1024], strides = [1, 1]} : vector<8x1024xf32> to vector<1x1024xf32>
    %cst_26 = arith.constant 0.000000e+00 : f32
    %131 = vector.broadcast %cst_26 : f32 to vector<1x1024xf32>
    %132 = arith.cmpf oge, %130, %131 : vector<1x1024xf32>
    %cst_27 = arith.constant 2.000000e-01 : f32
    %133 = vector.broadcast %cst_27 : f32 to vector<1x1024xf32>
    %134 = arith.mulf %133, %130 : vector<1x1024xf32>
    %135 = arith.select %132, %130, %134 : vector<1x1024xi1>, vector<1x1024xf32>
    %136 = vector.extract_strided_slice %9 {offsets = [0, 2], sizes = [8, 1], strides = [1, 1]} : vector<8x4xf32> to vector<8x1xf32>
    %137 = vector.broadcast %136 : vector<8x1xf32> to vector<8x1024xf32>
    %138 = vector.broadcast %135 : vector<1x1024xf32> to vector<8x1024xf32>
    %139 = arith.mulf %137, %138 : vector<8x1024xf32>
    %140 = arith.addf %107, %139 : vector<8x1024xf32>
    %c4_i32_28 = arith.constant 4 : i32
    %141 = vector.broadcast %c4_i32_28 : i32 to vector<1x1024xi32>
    %142 = arith.shrsi %10, %141 : vector<1x1024xi32>
    %c1_i32_29 = arith.constant 1 : i32
    %143 = vector.broadcast %c1_i32_29 : i32 to vector<1x1024xi32>
    %144 = arith.andi %142, %143 : vector<1x1024xi32>
    %c16_i32_30 = arith.constant 16 : i32
    %145 = tpu.dynamic_rotate %129 by %c16_i32_30 dim 1 : vector<8x1024xf32>, i32 -> vector<8x1024xf32>
    %c1008_i32 = arith.constant 1008 : i32
    %146 = tpu.dynamic_rotate %129 by %c1008_i32 dim 1 : vector<8x1024xf32>, i32 -> vector<8x1024xf32>
    %147 = arith.cmpi ne, %144, %19 : vector<1x1024xi32>
    %148 = vector.shape_cast %147 : vector<1x1024xi1> to vector<1x1024xi1>
    %149 = vector.broadcast %148 : vector<1x1024xi1> to vector<8x1024xi1>
    %150 = arith.select %149, %146, %145 : vector<8x1024xi1>, vector<8x1024xf32>
    %151 = arith.addf %129, %150 : vector<8x1024xf32>
    %c20_i32 = arith.constant 20 : i32
    %152 = vector.broadcast %c20_i32 : i32 to vector<1x1024xi32>
    %153 = arith.shrsi %10, %152 : vector<1x1024xi32>
    %c1_i32_31 = arith.constant 1 : i32
    %154 = vector.broadcast %c1_i32_31 : i32 to vector<1x1024xi32>
    %155 = arith.andi %153, %154 : vector<1x1024xi32>
    %c512_i32 = arith.constant 512 : i32
    %156 = tpu.dynamic_rotate %151 by %c512_i32 dim 1 : vector<8x1024xf32>, i32 -> vector<8x1024xf32>
    %c512_i32_32 = arith.constant 512 : i32
    %157 = tpu.dynamic_rotate %151 by %c512_i32_32 dim 1 : vector<8x1024xf32>, i32 -> vector<8x1024xf32>
    %158 = arith.cmpi ne, %155, %19 : vector<1x1024xi32>
    %159 = vector.shape_cast %158 : vector<1x1024xi1> to vector<1x1024xi1>
    %160 = vector.broadcast %159 : vector<1x1024xi1> to vector<8x1024xi1>
    %161 = arith.select %160, %157, %156 : vector<8x1024xi1>, vector<8x1024xf32>
    %162 = arith.addf %151, %161 : vector<8x1024xf32>
    %163 = vector.extract_strided_slice %162 {offsets = [3, 0], sizes = [1, 1024], strides = [1, 1]} : vector<8x1024xf32> to vector<1x1024xf32>
    %cst_33 = arith.constant 0.000000e+00 : f32
    %164 = vector.broadcast %cst_33 : f32 to vector<1x1024xf32>
    %165 = arith.cmpf oge, %163, %164 : vector<1x1024xf32>
    %cst_34 = arith.constant 2.000000e-01 : f32
    %166 = vector.broadcast %cst_34 : f32 to vector<1x1024xf32>
    %167 = arith.mulf %166, %163 : vector<1x1024xf32>
    %168 = arith.select %165, %163, %167 : vector<1x1024xi1>, vector<1x1024xf32>
    %169 = vector.extract_strided_slice %9 {offsets = [0, 3], sizes = [8, 1], strides = [1, 1]} : vector<8x4xf32> to vector<8x1xf32>
    %170 = vector.broadcast %169 : vector<8x1xf32> to vector<8x1024xf32>
    %171 = vector.broadcast %168 : vector<1x1024xf32> to vector<8x1024xf32>
    %172 = arith.mulf %170, %171 : vector<8x1024xf32>
    %173 = arith.addf %140, %172 : vector<8x1024xf32>
    %cst_35 = arith.constant 0.000000e+00 : f32
    %174 = vector.broadcast %cst_35 : f32 to vector<8x1024xf32>
    %175 = arith.cmpf oge, %173, %174 : vector<8x1024xf32>
    %cst_36 = arith.constant 2.000000e-01 : f32
    %176 = vector.broadcast %cst_36 : f32 to vector<8x1024xf32>
    %177 = arith.mulf %176, %173 : vector<8x1024xf32>
    %178 = arith.select %175, %173, %177 : vector<8x1024xi1>, vector<8x1024xf32>
    %c0_37 = arith.constant 0 : index
    %c0_38 = arith.constant 0 : index
    %c0_39 = arith.constant 0 : index
    %179 = vector.load %arg7[%c0_37, %c0_38, %c0_39] : memref<1x8x1024xf32, #tpu.memory_space<vmem>>, vector<1x8x1024xf32>
    %180 = vector.shape_cast %179 : vector<1x8x1024xf32> to vector<8x1024xf32>
    %181 = vector.shape_cast %178 : vector<8x1024xf32> to vector<1x8x1024xf32>
    tpu.vector_store %arg7[%c0_37, %c0_38, %c0_39], %181 {strides = array<i32>} : memref<1x8x1024xf32, #tpu.memory_space<vmem>>, vector<1x8x1024xf32>,
    return
  }
  func.func @transform_0(%arg0: i32, %arg1: i32) -> (i32, i32) {
    %c0_i32 = arith.constant 0 : i32
    %c0_i32_0 = arith.constant 0 : i32
    %c0_i32_1 = arith.constant 0 : i32
    return %c0_i32, %c0_i32_0 : i32, i32
  }
  func.func @transform_1(%arg0: i32, %arg1: i32) -> (i32, i32) {
    %c0_i32 = arith.constant 0 : i32
    %c0_i32_0 = arith.constant 0 : i32
    %c0_i32_1 = arith.constant 0 : i32
    return %c0_i32, %c0_i32_0 : i32, i32
  }
  func.func @transform_2(%arg0: i32, %arg1: i32) -> (i32, i32) {
    %c0_i32 = arith.constant 0 : i32
    %c0_i32_0 = arith.constant 0 : i32
    %c0_i32_1 = arith.constant 0 : i32
    return %c0_i32, %c0_i32_0 : i32, i32
  }
  func.func @transform_3(%arg0: i32, %arg1: i32) -> (i32, i32) {
    %c0_i32 = arith.constant 0 : i32
    %c0_i32_0 = arith.constant 0 : i32
    %c0_i32_1 = arith.constant 0 : i32
    return %c0_i32, %c0_i32_0 : i32, i32
  }
  func.func @transform_4(%arg0: i32, %arg1: i32) -> (i32, i32, i32) {
    %c0_i32 = arith.constant 0 : i32
    %c0_i32_0 = arith.constant 0 : i32
    return %arg0, %c0_i32, %arg1 : i32, i32, i32
  }
  func.func @transform_5(%arg0: i32, %arg1: i32) -> (i32, i32, i32) {
    %c0_i32 = arith.constant 0 : i32
    %c0_i32_0 = arith.constant 0 : i32
    return %arg0, %c0_i32, %arg1 : i32, i32, i32
  }
}

</mosaic_0001>

<llo_original>
// kernel: tpu_custom_call.1
$region0: #{tpu_custom_call.1}
  #allocation0 [shape = 'u32[]', space=smem, size = 0x4, offset = 0x4, fixed_abs, tag = 'smem constant byte address 0x4 - core index']
  #allocation1 [shape = 'u32[144,128]{1,0:T(1,128)}', space=vmem, size = 0x12000, scoped, tag = 'internal scratch']
  %s0 = inlined_call_operand.vmem [shape: f32[16,4], index: 0, kind: input, shape index: {}]
  %s1 = inlined_call_operand.vmem [shape: f32[8,4], index: 1, kind: input, shape index: {}]
  %s2 = inlined_call_operand.vmem [shape: f32[8,1], index: 2, kind: input, shape index: {}]
  %s3 = inlined_call_operand.vmem [shape: s32[1,1024], index: 3, kind: input, shape index: {}]
  %s4 = inlined_call_operand.hbm [shape: f32[2,4,1024], index: 4, kind: input, shape index: {}]
  %s5 = inlined_call_operand.hbm [shape: f32[2,8,1024], index: 5, kind: output, shape index: {}]
  %s6 = sld [smem:[#allocation0]]
  $region57: #{tpu_custom_call.1} parent=0
    _
  %s8 = ssub.s32 1, %s6
  %s9 = scalar_select 0, %s8, %s6
  $region1: #{tpu_custom_call.1} parent=0
    #allocation2 [shape = 'u8[32768]{0}', space=vmem, size = 0x8000, scoped, tag = 'input window, operand 4']
    #allocation3 [shape = 's32[2]{0}', space=sflag, size = 0x8, scoped, tag = 'scoped memory for tpu_custom_call.1']
    #allocation4 [shape = 's32[2]{0}', space=sflag, size = 0x8, scoped, tag = 'scoped memory for tpu_custom_call.1']
    #allocation5 [shape = 'u8[65536]{0}', space=vmem, size = 0x10000, scoped, tag = 'output window, operand 0']
    %10 = vsyncpa [#allocation3], 0
    %s11 = scalar_lea.sflag [#allocation3], 1
    %12 = vsyncpa %s11, 0
    %13 = vsyncpa [#allocation4], 0
    %s14 = scalar_lea.sflag [#allocation4], 1
    %15 = vsyncpa %s14, 0
    loop: start=0, step=1, limit=4
    $region2: #{tpu_custom_call.1} parent=1 // loop_pre_header
      _
    $region3: #{tpu_custom_call.1} parent=1 // loop_header
      %s17 = sphi 0, %s21
      %p18 = scmp.ge.s32.totalorder %s17, 4
      %s24 = sphi 0, %s36
      %s25 = sphi 0, %s32
      %s26 = sphi 0, %s24
      %s27 = sphi 0, %s25
      %s28 = sphi 0, %s26
      %s29 = sphi 0, %s27
      %s37 = sphi 0, %s37
      %s39 = sphi 0, %s37
      %s40 = sphi 0, %s39
      %s54 = sphi 0, %s40
      %s58 = sphi 0, %s58
      %s60 = sphi 0, %s58
      %s61 = sphi 0, %s60
      %s75 = sphi 0, %s61
      %s79 = sphi 0, %s79
      %s81 = sphi 0, %s79
      %s82 = sphi 0, %s81
      %s96 = sphi 0, %s82
      %s100 = sphi 0, %s100
      %s102 = sphi 0, %s100
      %s103 = sphi 0, %s102
      %s117 = sphi 0, %s103
      %s125 = sphi 0, %s127
      %s128 = sphi 0, %s125
      %s129 = sphi 0, %s128
      %s145 = sphi 0, %s129
      %s153 = sphi 0, %s155
      %s156 = sphi 0, %s153
      %s157 = sphi 0, %s156
      %s173 = sphi 0, %s157
    $region4: #{tpu_custom_call.1} parent=1 // loop_header_branch
      %20 = sbr.rel (%p18) target = $region8
    $region5: #{tpu_custom_call.1} parent=1 // loop_body
      %s22 = ssub.s32 %s17, 1
      %s23 = ssub.s32 %s17, 2
      %s30 = sadd.s32 1, %s25
      %p31 = scmp.ge.s32.totalorder %s30, 1
      %s32 = scalar_select %p31, 0, %s30
      %s33 = sadd.s32 1, %s24
      %s34 = scalar_select %p31, %s33, %s24
      %p35 = scmp.ge.s32.totalorder %s34, 2
      %s36 = scalar_select %p35, 0, %s34
      %s38 = sadd.s32 %s37, 1
      %p41 = scmp.eq.s32.totalorder %s17, 1
      %p42 = scmp.ne.s32.totalorder %s37, %s39
      %p43 = scmp.eq.s32.totalorder %s17, 0
      %p44 = por %p42, %p43
      %p45 = scmp.ne.s32.totalorder %s37, %s39
      %p46 = scmp.eq.s32.totalorder %s22, 1
      %p47 = por %p45, %p46
      %p48 = scmp.ne.s32.totalorder %s39, %s40
      %p49 = scmp.eq.s32.totalorder %s22, 0
      %p50 = por %p48, %p49
      %p51 = scmp.ne.s32.totalorder %s39, %s40
      %p52 = scmp.eq.s32.totalorder %s23, 1
      %p53 = por %p51, %p52
      %p55 = scmp.ne.s32.totalorder %s40, %s54
      %p56 = scmp.eq.s32.totalorder %s23, 0
      %p57 = por %p55, %p56
      %s59 = sadd.s32 %s58, 1
      %p62 = scmp.eq.s32.totalorder %s17, 1
      %p63 = scmp.ne.s32.totalorder %s58, %s60
      %p64 = scmp.eq.s32.totalorder %s17, 0
      %p65 = por %p63, %p64
      %p66 = scmp.ne.s32.totalorder %s58, %s60
      %p67 = scmp.eq.s32.totalorder %s22, 1
      %p68 = por %p66, %p67
      %p69 = scmp.ne.s32.totalorder %s60, %s61
      %p70 = scmp.eq.s32.totalorder %s22, 0
      %p71 = por %p69, %p70
      %p72 = scmp.ne.s32.totalorder %s60, %s61
      %p73 = scmp.eq.s32.totalorder %s23, 1
      %p74 = por %p72, %p73
      %p76 = scmp.ne.s32.totalorder %s61, %s75
      %p77 = scmp.eq.s32.totalorder %s23, 0
      %p78 = por %p76, %p77
      %s80 = sadd.s32 %s79, 1
      %p83 = scmp.eq.s32.totalorder %s17, 1
      %p84 = scmp.ne.s32.totalorder %s79, %s81
      %p85 = scmp.eq.s32.totalorder %s17, 0
      %p86 = por %p84, %p85
      %p87 = scmp.ne.s32.totalorder %s79, %s81
      %p88 = scmp.eq.s32.totalorder %s22, 1
      %p89 = por %p87, %p88
      %p90 = scmp.ne.s32.totalorder %s81, %s82
      %p91 = scmp.eq.s32.totalorder %s22, 0
      %p92 = por %p90, %p91
      %p93 = scmp.ne.s32.totalorder %s81, %s82
      %p94 = scmp.eq.s32.totalorder %s23, 1
      %p95 = por %p93, %p94
      %p97 = scmp.ne.s32.totalorder %s82, %s96
      %p98 = scmp.eq.s32.totalorder %s23, 0
      %p99 = por %p97, %p98
      %s101 = sadd.s32 %s100, 1
      %p104 = scmp.eq.s32.totalorder %s17, 1
      %p105 = scmp.ne.s32.totalorder %s100, %s102
      %p106 = scmp.eq.s32.totalorder %s17, 0
      %p107 = por %p105, %p106
      %p108 = scmp.ne.s32.totalorder %s100, %s102
      %p109 = scmp.eq.s32.totalorder %s22, 1
      %p110 = por %p108, %p109
      %p111 = scmp.ne.s32.totalorder %s102, %s103
      %p112 = scmp.eq.s32.totalorder %s22, 0
      %p113 = por %p111, %p112
      %p114 = scmp.ne.s32.totalorder %s102, %s103
      %p115 = scmp.eq.s32.totalorder %s23, 1
      %p116 = por %p114, %p115
      %p118 = scmp.ne.s32.totalorder %s103, %s117
      %p119 = scmp.eq.s32.totalorder %s23, 0
      %p120 = por %p118, %p119
      %s121 = ssub.s32 %s24, %s36
      %s122 = ssub.s32 %s25, %s32
      %s123 = sor.u32 %s121, %s122
      %p124 = scmp.eq.s32.totalorder %s123, 0
      %s126 = sadd.s32 %s125, 1
      %s127 = scalar_select %p124, %s125, %s126
      %p130 = pneg %p124
      %p131 = scmp.eq.s32.totalorder %s17, 1
      %p132 = por %p130, %p131
      %p133 = scmp.ne.s32.totalorder %s125, %s128
      %p134 = scmp.eq.s32.totalorder %s17, 0
      %p135 = por %p133, %p134
      %p136 = scmp.ne.s32.totalorder %s125, %s128
      %p137 = scmp.eq.s32.totalorder %s22, 1
      %p138 = por %p136, %p137
      %p139 = scmp.ne.s32.totalorder %s128, %s129
      %p140 = scmp.eq.s32.totalorder %s22, 0
      %p141 = por %p139, %p140
      %p142 = scmp.ne.s32.totalorder %s128, %s129
      %p143 = scmp.eq.s32.totalorder %s23, 1
      %p144 = por %p142, %p143
      %p146 = scmp.ne.s32.totalorder %s129, %s145
      %p147 = scmp.eq.s32.totalorder %s23, 0
      %p148 = por %p146, %p147
      %s149 = ssub.s32 %s24, %s36
      %s150 = ssub.s32 %s25, %s32
      %s151 = sor.u32 %s149, %s150
      %p152 = scmp.eq.s32.totalorder %s151, 0
      %s154 = sadd.s32 %s153, 1
      %s155 = scalar_select %p152, %s153, %s154
      %p158 = pneg %p152
      %p159 = scmp.eq.s32.totalorder %s17, 1
      %p160 = por %p158, %p159
      %p161 = scmp.ne.s32.totalorder %s153, %s156
      %p162 = scmp.eq.s32.totalorder %s17, 0
      %p163 = por %p161, %p162
      %p164 = scmp.ne.s32.totalorder %s153, %s156
      %p165 = scmp.eq.s32.totalorder %s22, 1
      %p166 = por %p164, %p165
      %p167 = scmp.ne.s32.totalorder %s156, %s157
      %p168 = scmp.eq.s32.totalorder %s22, 0
      %p169 = por %p167, %p168
      %p170 = scmp.ne.s32.totalorder %s156, %s157
      %p171 = scmp.eq.s32.totalorder %s23, 1
      %p172 = por %p170, %p171
      %p174 = scmp.ne.s32.totalorder %s157, %s173
      %p175 = scmp.eq.s32.totalorder %s23, 0
      %p176 = por %p174, %p175
      %p177 = scmp.le.s32.totalorder 1, %s17
      %p178 = scmp.lt.s32.totalorder %s17, 3
      %p179 = pnand %p177, %p178
      %p180 = pneg %p179
      // Predicated region
      $region9: #{tpu_custom_call.1} parent=5 // pred_check
        _
      $region10: #{tpu_custom_call.1} parent=5 // pred_check_branch
        %182 = sbr.rel (%p179) target = $region12
      $region11: #{tpu_custom_call.1} parent=5 // pred_region
        %s183 = ssub.s32 %s17, 1
        // Predicated region
        $region13: #{tpu_custom_call.1} parent=11 // pred_check
          %p184 = pneg %p50
        $region14: #{tpu_custom_call.1} parent=11 // pred_check_branch
          %186 = sbr.rel (%p184) target = $region16
        $region15: #{tpu_custom_call.1} parent=11 // pred_region
          _
        $region16: #{tpu_custom_call.1} parent=11 // pred_fallthru
          _
        // Predicated region
        $region17: #{tpu_custom_call.1} parent=11 // pred_check
          %p187 = pneg %p71
        $region18: #{tpu_custom_call.1} parent=11 // pred_check_branch
          %189 = sbr.rel (%p187) target = $region20
        $region19: #{tpu_custom_call.1} parent=11 // pred_region
          _
        $region20: #{tpu_custom_call.1} parent=11 // pred_fallthru
          _
        // Predicated region
        $region21: #{tpu_custom_call.1} parent=11 // pred_check
          %p190 = pneg %p92
        $region22: #{tpu_custom_call.1} parent=11 // pred_check_branch
          %192 = sbr.rel (%p190) target = $region24
        $region23: #{tpu_custom_call.1} parent=11 // pred_region
          _
        $region24: #{tpu_custom_call.1} parent=11 // pred_fallthru
          _
        // Predicated region
        $region25: #{tpu_custom_call.1} parent=11 // pred_check
          %p193 = pneg %p113
        $region26: #{tpu_custom_call.1} parent=11 // pred_check_branch
          %195 = sbr.rel (%p193) target = $region28
        $region27: #{tpu_custom_call.1} parent=11 // pred_region
          _
        $region28: #{tpu_custom_call.1} parent=11 // pred_fallthru
          _
      $region12: #{tpu_custom_call.1} parent=5 // pred_fallthru
        _
      %p196 = scmp.lt.s32.totalorder %s17, 2
      // Predicated region
      $region29: #{tpu_custom_call.1} parent=5 // pred_check
        %p197 = pneg %p196
      $region30: #{tpu_custom_call.1} parent=5 // pred_check_branch
        %199 = sbr.rel (%p197) target = $region32
      $region31: #{tpu_custom_call.1} parent=5 // pred_region
        // Predicated region
        $region33: #{tpu_custom_call.1} parent=31 // pred_check
          %p200 = pneg %p135
        $region34: #{tpu_custom_call.1} parent=31 // pred_check_branch
          %202 = sbr.rel (%p200) target = $region36
        $region35: #{tpu_custom_call.1} parent=31 // pred_region
          %s203 = sand.u32 %s125, 1
          %s204 = scalar_lea.sflag [#allocation3], %s203
          %s205 = sand.u32 %s125, 1
          %s206 = smul.addr %s205, 32
          %s207 = scalar_lea.vmem [#allocation2], %s206
          %s208 = smul.u32 8, %s25
          %s210 = ssub.s32 512, 512
          %211 = vsyncadd %s204, %s210
          %s212 = smul.addr %s24, 8
          %s213 = sadd.s32 %s208, %s212
          %s214 = smul.addr %s213, 64
          %s215 = scalar_lea.hbm %s4, %s214
          %s217 = sshll.u32 %s207, 4
          %s218 = int_to_ptr.vmem [resolvable:$true] %s217
          %220 = dma.hbm_to_vmem [thread:$0]  %s215, 512, %s218, %s204
        $region36: #{tpu_custom_call.1} parent=31 // pred_fallthru
          _
      $region32: #{tpu_custom_call.1} parent=5 // pred_fallthru
        _
      %p221 = scmp.le.s32.totalorder 1, %s17
      %p222 = scmp.lt.s32.totalorder %s17, 3
      %p223 = pnand %p221, %p222
      %p224 = pneg %p223
      // Predicated region
      $region37: #{tpu_custom_call.1} parent=5 // pred_check
        _
      $region38: #{tpu_custom_call.1} parent=5 // pred_check_branch
        %226 = sbr.rel (%p223) target = $region40
      $region39: #{tpu_custom_call.1} parent=5 // pred_region
        %s227 = ssub.s32 %s17, 1
        %s228 = sand.u32 %s128, 1
        %s229 = scalar_lea.sflag [#allocation3], %s228
        %s230 = sand.u32 %s128, 1
        %s231 = smul.addr %s230, 32
        %s232 = scalar_lea.vmem [#allocation2], %s231
        // Predicated region
        $region41: #{tpu_custom_call.1} parent=39 // pred_check
          %p233 = pneg %p141
        $region42: #{tpu_custom_call.1} parent=39 // pred_check_branch
          %235 = sbr.rel (%p233) target = $region44
        $region43: #{tpu_custom_call.1} parent=39 // pred_region
          %236 = dma.done %s229, 512
        $region44: #{tpu_custom_call.1} parent=39 // pred_fallthru
          _
        %p237 = pneg %p50
        %p238 = pneg %p47
        %p239 = pneg %p71
        %p240 = pneg %p68
        %p241 = pneg %p92
        %p242 = pneg %p89
        %p243 = pneg %p113
        %p244 = pneg %p110
        %s245 = sand.u32 %s128, 1
        %s246 = scalar_lea.sflag [#allocation3], %s245
        %s247 = sand.u32 %s128, 1
        %s248 = smul.addr %s247, 32
        %s249 = scalar_lea.vmem [#allocation2], %s248
        %p250 = pneg %p141
        %p251 = pneg %p138
        %p252 = pneg %p169
        %p253 = pneg %p166
        %s254 = sand.u32 %s156, 1
        %s255 = scalar_lea.sflag [#allocation4], %s254
        %s256 = sand.u32 %s156, 1
        %s257 = smul.addr %s256, 64
        %s258 = scalar_lea.vmem [#allocation5], %s257
        %s259 = smul.u32 8, %s27
        %s260 = smul.u32 8, %s27
        %v261 = vld [vmem:[%s232] sm:$0xff]
        %v262 = vld [vmem:[%s232 + $0x8] sm:$0xff]
        %v263 = vld [vmem:[%s232 + $0x10] sm:$0xff]
        %v264 = vld [vmem:[%s232 + $0x18] sm:$0xff]
        %v265 = vld [vmem:[%s0] sm:$0xff]
        %v266 = vld [vmem:[%s0 + $0x8] sm:$0xff]
        %v271 = vcombine.high %v261, %v261
        %v272 = vcombine.high %v262, %v262
        %v273 = vcombine.high %v263, %v263
        %v274 = vcombine.high %v264, %v264
        %vm275 = vcmask 31744
        %v277 = vsel %vm275, %v265, 0
        %v280 = vsel %vm275, %v266, 0
        %vm282 = vcmask 1043456
        %v283 = vsel %vm282, %v261, 0
        %v285 = vsel %vm282, %v271, 0
        %v287 = vsel %vm282, %v262, 0
        %v289 = vsel %vm282, %v272, 0
        %v291 = vsel %vm282, %v263, 0
        %v293 = vsel %vm282, %v273, 0
        %v295 = vsel %vm282, %v264, 0
        %v297 = vsel %vm282, %v274, 0
        %299 = vmatprep.subr.mxu0 0.0
        %300 = vmatpush1.msra.mxu0 0.0
        %301 = vmatprep.subr.mxu0 0.0
        %302 = vmatpush1.msra.mxu0 0.0
        %303 = vmatprep.subr.mxu0 0.0
        %304 = vmatpush1.msra.mxu0 0.0
        %305 = vmatprep.subr.mxu0 0.0
        %306 = vmatpush1.msra.mxu0 0.0
        %307 = vmatprep.subr.mxu0 0.0
        %308 = vmatpush1.msra.mxu0 0.0
        %309 = vmatprep.subr.mxu0 0.0
        %310 = vmatpush1.msra.mxu0 0.0
        %311 = vmatprep.subr.mxu0 0.0
        %312 = vmatpush1.msra.mxu0 0.0
        %313 = vmatprep.subr.mxu0 0.0
        %314 = vmatpush1.msra.mxu0 0.0
        %315 = vmatprep.subr.mxu0 0.0
        %316 = vmatpush1.msra.mxu0 0.0
        %317 = vmatprep.subr.mxu0 0.0
        %318 = vmatpush1.msra.mxu0 0.0
        %319 = vmatprep.subr.mxu0 0.0
        %320 = vmatpush1.msra.mxu0 0.0
        %321 = vmatprep.subr.mxu0 0.0
        %322 = vmatpush1.msra.mxu0 0.0
        %323 = vmatprep.subr.mxu0 0.0
        %324 = vmatpush1.msra.mxu0 0.0
        %325 = vmatprep.subr.mxu0 0.0
        %326 = vmatpush1.msra.mxu0 0.0
        %327 = vmatprep.subr.mxu0 0.0
        %328 = vmatpush1.msra.mxu0 0.0
        %329 = vmatprep.subr.mxu0 %v285
        %330 = vmatpush1.msra.mxu0 %v283
        %331 = vmatprep.subr.mxu0 0.0
        %332 = vmatpush2.msra.mxu0 0.0
        %333 = vmatprep.subr.mxu0 0.0
        %334 = vmatpush2.msra.mxu0 0.0
        %335 = vmatprep.subr.mxu0 0.0
        %336 = vmatpush2.msra.mxu0 0.0
        %337 = vmatprep.subr.mxu0 0.0
        %338 = vmatpush2.msra.mxu0 0.0
        %339 = vmatprep.subr.mxu0 0.0
        %340 = vmatpush2.msra.mxu0 0.0
        %341 = vmatprep.subr.mxu0 0.0
        %342 = vmatpush2.msra.mxu0 0.0
        %343 = vmatprep.subr.mxu0 0.0
        %344 = vmatpush2.msra.mxu0 0.0
        %345 = vmatprep.subr.mxu0 0.0
        %346 = vmatpush2.msra.mxu0 0.0
        %347 = vmatprep.subr.mxu0 0.0
        %348 = vmatpush2.msra.mxu0 0.0
        %349 = vmatprep.subr.mxu0 0.0
        %350 = vmatpush2.msra.mxu0 0.0
        %351 = vmatprep.subr.mxu0 0.0
        %352 = vmatpush2.msra.mxu0 0.0
        %353 = vmatprep.subr.mxu0 0.0
        %354 = vmatpush2.msra.mxu0 0.0
        %355 = vmatprep.subr.mxu0 0.0
        %356 = vmatpush2.msra.mxu0 0.0
        %357 = vmatprep.subr.mxu0 0.0
        %358 = vmatpush2.msra.mxu0 0.0
        %359 = vmatprep.subr.mxu0 0.0
        %360 = vmatpush2.msra.mxu0 0.0
        %361 = vmatprep.subr.mxu0 0.0
        %362 = vmatpush2.msra.mxu0 0.0
        %363 = vmatprep.mubr.f32.mxu0 0.0
        %364 = vmatmul.mubr.f32.gmra.mxu0 %v277
        %v365 = vpop.f32.mrf.mxu0
        %v366 = vadd.f32 0.0, %v365
        %v367 = vpop.f32.mrf.mxu0
        %v368 = vadd.f32 0.0, %v367
        %369 = vmatprep.mubr.f32.mxu0 0.0
        %370 = vmatmul.mubr.f32.gmra.mxu0 %v280
        %v371 = vpop.f32.mrf.mxu0
        %v372 = vadd.f32 0.0, %v371
        %v373 = vpop.f32.mrf.mxu0
        %v374 = vadd.f32 0.0, %v373
        %375 = vdwg.mxu0
        %376 = vmatprep.subr.mxu0 0.0
        %377 = vmatpush1.msra.mxu0 0.0
        %378 = vmatprep.subr.mxu0 0.0
        %379 = vmatpush1.msra.mxu0 0.0
        %380 = vmatprep.subr.mxu0 0.0
        %381 = vmatpush1.msra.mxu0 0.0
        %382 = vmatprep.subr.mxu0 0.0
        %383 = vmatpush1.msra.mxu0 0.0
        %384 = vmatprep.subr.mxu0 0.0
        %385 = vmatpush1.msra.mxu0 0.0
        %386 = vmatprep.subr.mxu0 0.0
        %387 = vmatpush1.msra.mxu0 0.0
        %388 = vmatprep.subr.mxu0 0.0
        %389 = vmatpush1.msra.mxu0 0.0
        %390 = vmatprep.subr.mxu0 0.0
        %391 = vmatpush1.msra.mxu0 0.0
        %392 = vmatprep.subr.mxu0 0.0
        %393 = vmatpush1.msra.mxu0 0.0
        %394 = vmatprep.subr.mxu0 0.0
        %395 = vmatpush1.msra.mxu0 0.0
        %396 = vmatprep.subr.mxu0 0.0
        %397 = vmatpush1.msra.mxu0 0.0
        %398 = vmatprep.subr.mxu0 0.0
        %399 = vmatpush1.msra.mxu0 0.0
        %400 = vmatprep.subr.mxu0 0.0
        %401 = vmatpush1.msra.mxu0 0.0
        %402 = vmatprep.subr.mxu0 0.0
        %403 = vmatpush1.msra.mxu0 0.0
        %404 = vmatprep.subr.mxu0 0.0
        %405 = vmatpush1.msra.mxu0 0.0
        %406 = vmatprep.subr.mxu0 %v289
        %407 = vmatpush1.msra.mxu0 %v287
        %408 = vmatprep.subr.mxu0 0.0
        %409 = vmatpush2.msra.mxu0 0.0
        %410 = vmatprep.subr.mxu0 0.0
        %411 = vmatpush2.msra.mxu0 0.0
        %412 = vmatprep.subr.mxu0 0.0
        %413 = vmatpush2.msra.mxu0 0.0
        %414 = vmatprep.subr.mxu0 0.0
        %415 = vmatpush2.msra.mxu0 0.0
        %416 = vmatprep.subr.mxu0 0.0
        %417 = vmatpush2.msra.mxu0 0.0
        %418 = vmatprep.subr.mxu0 0.0
        %419 = vmatpush2.msra.mxu0 0.0
        %420 = vmatprep.subr.mxu0 0.0
        %421 = vmatpush2.msra.mxu0 0.0
        %422 = vmatprep.subr.mxu0 0.0
        %423 = vmatpush2.msra.mxu0 0.0
        %424 = vmatprep.subr.mxu0 0.0
        %425 = vmatpush2.msra.mxu0 0.0
        %426 = vmatprep.subr.mxu0 0.0
        %427 = vmatpush2.msra.mxu0 0.0
        %428 = vmatprep.subr.mxu0 0.0
        %429 = vmatpush2.msra.mxu0 0.0
        %430 = vmatprep.subr.mxu0 0.0
        %431 = vmatpush2.msra.mxu0 0.0
        %432 = vmatprep.subr.mxu0 0.0
        %433 = vmatpush2.msra.mxu0 0.0
        %434 = vmatprep.subr.mxu0 0.0
        %435 = vmatpush2.msra.mxu0 0.0
        %436 = vmatprep.subr.mxu0 0.0
        %437 = vmatpush2.msra.mxu0 0.0
        %438 = vmatprep.subr.mxu0 0.0
        %439 = vmatpush2.msra.mxu0 0.0
        %440 = vmatprep.mubr.f32.mxu0 0.0
        %441 = vmatmul.mubr.f32.gmra.mxu0 %v277
        %v442 = vpop.f32.mrf.mxu0
        %v443 = vadd.f32 0.0, %v442
        %v444 = vpop.f32.mrf.mxu0
        %v445 = vadd.f32 0.0, %v444
        %446 = vmatprep.mubr.f32.mxu0 0.0
        %447 = vmatmul.mubr.f32.gmra.mxu0 %v280
        %v448 = vpop.f32.mrf.mxu0
        %v449 = vadd.f32 0.0, %v448
        %v450 = vpop.f32.mrf.mxu0
        %v451 = vadd.f32 0.0, %v450
        %452 = vdwg.mxu0
        %453 = vmatprep.subr.mxu0 0.0
        %454 = vmatpush1.msra.mxu0 0.0
        %455 = vmatprep.subr.mxu0 0.0
        %456 = vmatpush1.msra.mxu0 0.0
        %457 = vmatprep.subr.mxu0 0.0
        %458 = vmatpush1.msra.mxu0 0.0
        %459 = vmatprep.subr.mxu0 0.0
        %460 = vmatpush1.msra.mxu0 0.0
        %461 = vmatprep.subr.mxu0 0.0
        %462 = vmatpush1.msra.mxu0 0.0
        %463 = vmatprep.subr.mxu0 0.0
        %464 = vmatpush1.msra.mxu0 0.0
        %465 = vmatprep.subr.mxu0 0.0
        %466 = vmatpush1.msra.mxu0 0.0
        %467 = vmatprep.subr.mxu0 0.0
        %468 = vmatpush1.msra.mxu0 0.0
        %469 = vmatprep.subr.mxu0 0.0
        %470 = vmatpush1.msra.mxu0 0.0
        %471 = vmatprep.subr.mxu0 0.0
        %472 = vmatpush1.msra.mxu0 0.0
        %473 = vmatprep.subr.mxu0 0.0
        %474 = vmatpush1.msra.mxu0 0.0
        %475 = vmatprep.subr.mxu0 0.0
        %476 = vmatpush1.msra.mxu0 0.0
        %477 = vmatprep.subr.mxu0 0.0
        %478 = vmatpush1.msra.mxu0 0.0
        %479 = vmatprep.subr.mxu0 0.0
        %480 = vmatpush1.msra.mxu0 0.0
        %481 = vmatprep.subr.mxu0 0.0
        %482 = vmatpush1.msra.mxu0 0.0
        %483 = vmatprep.subr.mxu0 %v293
        %484 = vmatpush1.msra.mxu0 %v291
        %485 = vmatprep.subr.mxu0 0.0
        %486 = vmatpush2.msra.mxu0 0.0
        %487 = vmatprep.subr.mxu0 0.0
        %488 = vmatpush2.msra.mxu0 0.0
        %489 = vmatprep.subr.mxu0 0.0
        %490 = vmatpush2.msra.mxu0 0.0
        %491 = vmatprep.subr.mxu0 0.0
        %492 = vmatpush2.msra.mxu0 0.0
        %493 = vmatprep.subr.mxu0 0.0
        %494 = vmatpush2.msra.mxu0 0.0
        %495 = vmatprep.subr.mxu0 0.0
        %496 = vmatpush2.msra.mxu0 0.0
        %497 = vmatprep.subr.mxu0 0.0
        %498 = vmatpush2.msra.mxu0 0.0
        %499 = vmatprep.subr.mxu0 0.0
        %500 = vmatpush2.msra.mxu0 0.0
        %501 = vmatprep.subr.mxu0 0.0
        %502 = vmatpush2.msra.mxu0 0.0
        %503 = vmatprep.subr.mxu0 0.0
        %504 = vmatpush2.msra.mxu0 0.0
        %505 = vmatprep.subr.mxu0 0.0
        %506 = vmatpush2.msra.mxu0 0.0
        %507 = vmatprep.subr.mxu0 0.0
        %508 = vmatpush2.msra.mxu0 0.0
        %509 = vmatprep.subr.mxu0 0.0
        %510 = vmatpush2.msra.mxu0 0.0
        %511 = vmatprep.subr.mxu0 0.0
        %512 = vmatpush2.msra.mxu0 0.0
        %513 = vmatprep.subr.mxu0 0.0
        %514 = vmatpush2.msra.mxu0 0.0
        %515 = vmatprep.subr.mxu0 0.0
        %516 = vmatpush2.msra.mxu0 0.0
        %517 = vmatprep.mubr.f32.mxu0 0.0
        %518 = vmatmul.mubr.f32.gmra.mxu0 %v277
        %v519 = vpop.f32.mrf.mxu0
        %v520 = vadd.f32 0.0, %v519
        %v521 = vpop.f32.mrf.mxu0
        %v522 = vadd.f32 0.0, %v521
        %523 = vmatprep.mubr.f32.mxu0 0.0
        %524 = vmatmul.mubr.f32.gmra.mxu0 %v280
        %v525 = vpop.f32.mrf.mxu0
        %v526 = vadd.f32 0.0, %v525
        %v527 = vpop.f32.mrf.mxu0
        %v528 = vadd.f32 0.0, %v527
        %529 = vdwg.mxu0
        %530 = vmatprep.subr.mxu0 0.0
        %531 = vmatpush1.msra.mxu0 0.0
        %532 = vmatprep.subr.mxu0 0.0
        %533 = vmatpush1.msra.mxu0 0.0
        %534 = vmatprep.subr.mxu0 0.0
        %535 = vmatpush1.msra.mxu0 0.0
        %536 = vmatprep.subr.mxu0 0.0
        %537 = vmatpush1.msra.mxu0 0.0
        %538 = vmatprep.subr.mxu0 0.0
        %539 = vmatpush1.msra.mxu0 0.0
        %540 = vmatprep.subr.mxu0 0.0
        %541 = vmatpush1.msra.mxu0 0.0
        %542 = vmatprep.subr.mxu0 0.0
        %543 = vmatpush1.msra.mxu0 0.0
        %544 = vmatprep.subr.mxu0 0.0
        %545 = vmatpush1.msra.mxu0 0.0
        %546 = vmatprep.subr.mxu0 0.0
        %547 = vmatpush1.msra.mxu0 0.0
        %548 = vmatprep.subr.mxu0 0.0
        %549 = vmatpush1.msra.mxu0 0.0
        %550 = vmatprep.subr.mxu0 0.0
        %551 = vmatpush1.msra.mxu0 0.0
        %552 = vmatprep.subr.mxu0 0.0
        %553 = vmatpush1.msra.mxu0 0.0
        %554 = vmatprep.subr.mxu0 0.0
        %555 = vmatpush1.msra.mxu0 0.0
        %556 = vmatprep.subr.mxu0 0.0
        %557 = vmatpush1.msra.mxu0 0.0
        %558 = vmatprep.subr.mxu0 0.0
        %559 = vmatpush1.msra.mxu0 0.0
        %560 = vmatprep.subr.mxu0 %v297
        %561 = vmatpush1.msra.mxu0 %v295
        %562 = vmatprep.subr.mxu0 0.0
        %563 = vmatpush2.msra.mxu0 0.0
        %564 = vmatprep.subr.mxu0 0.0
        %565 = vmatpush2.msra.mxu0 0.0
        %566 = vmatprep.subr.mxu0 0.0
        %567 = vmatpush2.msra.mxu0 0.0
        %568 = vmatprep.subr.mxu0 0.0
        %569 = vmatpush2.msra.mxu0 0.0
        %570 = vmatprep.subr.mxu0 0.0
        %571 = vmatpush2.msra.mxu0 0.0
        %572 = vmatprep.subr.mxu0 0.0
        %573 = vmatpush2.msra.mxu0 0.0
        %574 = vmatprep.subr.mxu0 0.0
        %575 = vmatpush2.msra.mxu0 0.0
        %576 = vmatprep.subr.mxu0 0.0
        %577 = vmatpush2.msra.mxu0 0.0
        %578 = vmatprep.subr.mxu0 0.0
        %579 = vmatpush2.msra.mxu0 0.0
        %580 = vmatprep.subr.mxu0 0.0
        %581 = vmatpush2.msra.mxu0 0.0
        %582 = vmatprep.subr.mxu0 0.0
        %583 = vmatpush2.msra.mxu0 0.0
        %584 = vmatprep.subr.mxu0 0.0
        %585 = vmatpush2.msra.mxu0 0.0
        %586 = vmatprep.subr.mxu0 0.0
        %587 = vmatpush2.msra.mxu0 0.0
        %588 = vmatprep.subr.mxu0 0.0
        %589 = vmatpush2.msra.mxu0 0.0
        %590 = vmatprep.subr.mxu0 0.0
        %591 = vmatpush2.msra.mxu0 0.0
        %592 = vmatprep.subr.mxu0 0.0
        %593 = vmatpush2.msra.mxu0 0.0
        %594 = vmatprep.mubr.f32.mxu0 0.0
        %595 = vmatmul.mubr.f32.gmra.mxu0 %v277
        %v596 = vpop.f32.mrf.mxu0
        %v597 = vadd.f32 0.0, %v596
        %v598 = vpop.f32.mrf.mxu0
        %v599 = vadd.f32 0.0, %v598
        %600 = vmatprep.mubr.f32.mxu0 0.0
        %601 = vmatmul.mubr.f32.gmra.mxu0 %v280
        %v602 = vpop.f32.mrf.mxu0
        %v603 = vadd.f32 0.0, %v602
        %v604 = vpop.f32.mrf.mxu0
        %v605 = vadd.f32 0.0, %v604
        %606 = vdwg.mxu0
        %v607 = vld [vmem:[%s2] sm:$0xff]
        %609 = vset.pattern.permute.xlu0 0
        %610 = vperm.xlu0 %609, %v607
        %v611 = vpop.permute.xlu0 %610
        %v613 = vadd.f32 %v372, %v611
        %v614 = vadd.f32 %v374, %v611
        %v615 = vadd.f32 %v449, %v611
        %v616 = vadd.f32 %v451, %v611
        %v617 = vadd.f32 %v526, %v611
        %v618 = vadd.f32 %v528, %v611
        %v619 = vadd.f32 %v603, %v611
        %v620 = vadd.f32 %v605, %v611
        %v621 = vld [vmem:[%s1] sm:$0xff]
        %v622 = vld [vmem:[%s3] sm:$0xff]
        %v623 = vlaneseq
        %v624 = vand.u32 %v623, 127
        %v625 = vcvt.s32.f32 %v624
        %626 = vrot.lane.b32.xlu0 %v625, 1
        %v627 = vpop.permute.xlu0 %626
        %vm628 = vcmp.gt.f32.partialorder %v627, 64.0
        %v629 = vsel %vm628, 1, 0
        %630 = vset.pattern.permute.xlu0 0
        %631 = vperm.xlu0 %630, %v629
        %v632 = vpop.permute.xlu0 %631
        %v633 = vand.u32 %v622, 1
        %634 = vrot.lane.b32.xlu0 %v366, 1
        %v635 = vpop.permute.xlu0 %634
        %636 = vrot.lane.b32.xlu0 %v368, 1
        %v637 = vpop.permute.xlu0 %636
        %638 = vrot.lane.b32.xlu0 %v443, 1
        %v639 = vpop.permute.xlu0 %638
        %640 = vrot.lane.b32.xlu0 %v445, 1
        %v641 = vpop.permute.xlu0 %640
        %642 = vrot.lane.b32.xlu0 %v520, 1
        %v643 = vpop.permute.xlu0 %642
        %644 = vrot.lane.b32.xlu0 %v522, 1
        %v645 = vpop.permute.xlu0 %644
        %646 = vrot.lane.b32.xlu0 %v597, 1
        %v647 = vpop.permute.xlu0 %646
        %648 = vrot.lane.b32.xlu0 %v599, 1
        %v649 = vpop.permute.xlu0 %648
        %vm650 = vcmp.lt.s32.totalorder %v624, 1
        %v651 = vsel %vm650, %v647, %v649
        %v652 = vsel %vm650, %v645, %v647
        %v653 = vsel %vm650, %v643, %v645
        %v654 = vsel %vm650, %v641, %v643
        %v655 = vsel %vm650, %v639, %v641
        %v656 = vsel %vm650, %v637, %v639
        %v657 = vsel %vm650, %v635, %v637
        %v658 = vsel %vm650, %v649, %v635
        %659 = vrot.lane.b32.xlu0 %v366, 127
        %v660 = vpop.permute.xlu0 %659
        %661 = vrot.lane.b32.xlu0 %v368, 127
        %v662 = vpop.permute.xlu0 %661
        %663 = vrot.lane.b32.xlu0 %v443, 127
        %v664 = vpop.permute.xlu0 %663
        %665 = vrot.lane.b32.xlu0 %v445, 127
        %v666 = vpop.permute.xlu0 %665
        %667 = vrot.lane.b32.xlu0 %v520, 127
        %v668 = vpop.permute.xlu0 %667
        %669 = vrot.lane.b32.xlu0 %v522, 127
        %v670 = vpop.permute.xlu0 %669
        %671 = vrot.lane.b32.xlu0 %v597, 127
        %v672 = vpop.permute.xlu0 %671
        %673 = vrot.lane.b32.xlu0 %v599, 127
        %v674 = vpop.permute.xlu0 %673
        %vm675 = vcmp.lt.s32.totalorder %v624, 127
        %v676 = vsel %vm675, %v672, %v674
        %v677 = vsel %vm675, %v670, %v672
        %v678 = vsel %vm675, %v668, %v670
        %v679 = vsel %vm675, %v666, %v668
        %v680 = vsel %vm675, %v664, %v666
        %v681 = vsel %vm675, %v662, %v664
        %v682 = vsel %vm675, %v660, %v662
        %v683 = vsel %vm675, %v674, %v660
        %v684 = vlaneseq
        %v685 = vshrl.u32 %v684, 7
        %v686 = vsub.s32 0, %v685
        %v687 = vrot.slane %v632, %v686
        %vm688 = vcmp.ne.s32.totalorder %v633, %v687
        %v689 = vsel %vm688, 1, 0
        %v690 = vlaneseq
        %v691 = vshrl.u32 %v690, 7
        %v692 = vsub.s32 0, %v691
        %v693 = vrot.slane %v689, %v692
        %v694 = vlaneseq
        %v695 = vshrl.u32 %v694, 7
        %v696 = vsub.s32 1, %v695
        %v697 = vrot.slane %v689, %v696
        %v698 = vlaneseq
        %v699 = vshrl.u32 %v698, 7
        %v700 = vsub.s32 2, %v699
        %v701 = vrot.slane %v689, %v700
        %v702 = vlaneseq
        %v703 = vshrl.u32 %v702, 7
        %v704 = vsub.s32 3, %v703
        %v705 = vrot.slane %v689, %v704
        %v706 = vlaneseq
        %v707 = vshrl.u32 %v706, 7
        %v708 = vsub.s32 4, %v707
        %v709 = vrot.slane %v689, %v708
        %v710 = vlaneseq
        %v711 = vshrl.u32 %v710, 7
        %v712 = vsub.s32 5, %v711
        %v713 = vrot.slane %v689, %v712
        %v714 = vlaneseq
        %v715 = vshrl.u32 %v714, 7
        %v716 = vsub.s32 6, %v715
        %v717 = vrot.slane %v689, %v716
        %v718 = vlaneseq
        %v719 = vshrl.u32 %v718, 7
        %v720 = vsub.s32 7, %v719
        %v721 = vrot.slane %v689, %v720
        %vm722 = vcmp.eq.s32.totalorder %v693, 1
        %vm723 = vcmp.eq.s32.totalorder %v697, 1
        %vm724 = vcmp.eq.s32.totalorder %v701, 1
        %vm725 = vcmp.eq.s32.totalorder %v705, 1
        %vm726 = vcmp.eq.s32.totalorder %v709, 1
        %vm727 = vcmp.eq.s32.totalorder %v713, 1
        %vm728 = vcmp.eq.s32.totalorder %v717, 1
        %vm729 = vcmp.eq.s32.totalorder %v721, 1
        %v730 = vsel %vm722, %v682, %v658
        %v731 = vsel %vm723, %v681, %v657
        %v732 = vsel %vm724, %v680, %v656
        %v733 = vsel %vm725, %v679, %v655
        %v734 = vsel %vm726, %v678, %v654
        %v735 = vsel %vm727, %v677, %v653
        %v736 = vsel %vm728, %v676, %v652
        %v737 = vsel %vm729, %v683, %v651
        %v738 = vadd.f32 %v366, %v730
        %v739 = vadd.f32 %v368, %v731
        %v740 = vadd.f32 %v443, %v732
        %v741 = vadd.f32 %v445, %v733
        %v742 = vadd.f32 %v520, %v734
        %v743 = vadd.f32 %v522, %v735
        %v744 = vadd.f32 %v597, %v736
        %v745 = vadd.f32 %v599, %v737
        %v746 = vshra.s32 %v622, 16
        %v747 = vand.u32 %v746, 1
        %748 = vrot.lane.b32.xlu0 %v738, 32
        %v749 = vpop.permute.xlu0 %748
        %750 = vrot.lane.b32.xlu0 %v739, 32
        %v751 = vpop.permute.xlu0 %750
        %752 = vrot.lane.b32.xlu0 %v740, 32
        %v753 = vpop.permute.xlu0 %752
        %754 = vrot.lane.b32.xlu0 %v741, 32
        %v755 = vpop.permute.xlu0 %754
        %756 = vrot.lane.b32.xlu0 %v742, 32
        %v757 = vpop.permute.xlu0 %756
        %758 = vrot.lane.b32.xlu0 %v743, 32
        %v759 = vpop.permute.xlu0 %758
        %760 = vrot.lane.b32.xlu0 %v744, 32
        %v761 = vpop.permute.xlu0 %760
        %762 = vrot.lane.b32.xlu0 %v745, 32
        %v763 = vpop.permute.xlu0 %762
        %vm764 = vcmp.lt.s32.totalorder %v624, 32
        %v765 = vsel %vm764, %v761, %v763
        %v766 = vsel %vm764, %v759, %v761
        %v767 = vsel %vm764, %v757, %v759
        %v768 = vsel %vm764, %v755, %v757
        %v769 = vsel %vm764, %v753, %v755
        %v770 = vsel %vm764, %v751, %v753
        %v771 = vsel %vm764, %v749, %v751
        %v772 = vsel %vm764, %v763, %v749
        %773 = vrot.lane.b32.xlu0 %v738, 96
        %v774 = vpop.permute.xlu0 %773
        %775 = vrot.lane.b32.xlu0 %v739, 96
        %v776 = vpop.permute.xlu0 %775
        %777 = vrot.lane.b32.xlu0 %v740, 96
        %v778 = vpop.permute.xlu0 %777
        %779 = vrot.lane.b32.xlu0 %v741, 96
        %v780 = vpop.permute.xlu0 %779
        %781 = vrot.lane.b32.xlu0 %v742, 96
        %v782 = vpop.permute.xlu0 %781
        %783 = vrot.lane.b32.xlu0 %v743, 96
        %v784 = vpop.permute.xlu0 %783
        %785 = vrot.lane.b32.xlu0 %v744, 96
        %v786 = vpop.permute.xlu0 %785
        %787 = vrot.lane.b32.xlu0 %v745, 96
        %v788 = vpop.permute.xlu0 %787
        %vm789 = vcmp.lt.s32.totalorder %v624, 96
        %v790 = vsel %vm789, %v786, %v788
        %v791 = vsel %vm789, %v784, %v786
        %v792 = vsel %vm789, %v782, %v784
        %v793 = vsel %vm789, %v780, %v782
        %v794 = vsel %vm789, %v778, %v780
        %v795 = vsel %vm789, %v776, %v778
        %v796 = vsel %vm789, %v774, %v776
        %v797 = vsel %vm789, %v788, %v774
        %vm798 = vcmp.ne.s32.totalorder %v747, %v687
        %v799 = vsel %vm798, 1, 0
        %v800 = vlaneseq
        %v801 = vshrl.u32 %v800, 7
        %v802 = vsub.s32 0, %v801
        %v803 = vrot.slane %v799, %v802
        %v804 = vlaneseq
        %v805 = vshrl.u32 %v804, 7
        %v806 = vsub.s32 1, %v805
        %v807 = vrot.slane %v799, %v806
        %v808 = vlaneseq
        %v809 = vshrl.u32 %v808, 7
        %v810 = vsub.s32 2, %v809
        %v811 = vrot.slane %v799, %v810
        %v812 = vlaneseq
        %v813 = vshrl.u32 %v812, 7
        %v814 = vsub.s32 3, %v813
        %v815 = vrot.slane %v799, %v814
        %v816 = vlaneseq
        %v817 = vshrl.u32 %v816, 7
        %v818 = vsub.s32 4, %v817
        %v819 = vrot.slane %v799, %v818
        %v820 = vlaneseq
        %v821 = vshrl.u32 %v820, 7
        %v822 = vsub.s32 5, %v821
        %v823 = vrot.slane %v799, %v822
        %v824 = vlaneseq
        %v825 = vshrl.u32 %v824, 7
        %v826 = vsub.s32 6, %v825
        %v827 = vrot.slane %v799, %v826
        %v828 = vlaneseq
        %v829 = vshrl.u32 %v828, 7
        %v830 = vsub.s32 7, %v829
        %v831 = vrot.slane %v799, %v830
        %vm832 = vcmp.eq.s32.totalorder %v803, 1
        %vm833 = vcmp.eq.s32.totalorder %v807, 1
        %vm834 = vcmp.eq.s32.totalorder %v811, 1
        %vm835 = vcmp.eq.s32.totalorder %v815, 1
        %vm836 = vcmp.eq.s32.totalorder %v819, 1
        %vm837 = vcmp.eq.s32.totalorder %v823, 1
        %vm838 = vcmp.eq.s32.totalorder %v827, 1
        %vm839 = vcmp.eq.s32.totalorder %v831, 1
        %v840 = vsel %vm832, %v796, %v772
        %v841 = vsel %vm833, %v795, %v771
        %v842 = vsel %vm834, %v794, %v770
        %v843 = vsel %vm835, %v793, %v769
        %v844 = vsel %vm836, %v792, %v768
        %v845 = vsel %vm837, %v791, %v767
        %v846 = vsel %vm838, %v790, %v766
        %v847 = vsel %vm839, %v797, %v765
        %v848 = vadd.f32 %v738, %v840
        %v849 = vadd.f32 %v739, %v841
        %v850 = vadd.f32 %v740, %v842
        %v851 = vadd.f32 %v741, %v843
        %v852 = vadd.f32 %v742, %v844
        %v853 = vadd.f32 %v743, %v845
        %v854 = vadd.f32 %v744, %v846
        %v855 = vadd.f32 %v745, %v847
        %v856 = vshra.s32 %v622, 1
        %v857 = vand.u32 %v856, 1
        %858 = vrot.lane.b32.xlu0 %v848, 2
        %v859 = vpop.permute.xlu0 %858
        %860 = vrot.lane.b32.xlu0 %v849, 2
        %v861 = vpop.permute.xlu0 %860
        %862 = vrot.lane.b32.xlu0 %v850, 2
        %v863 = vpop.permute.xlu0 %862
        %864 = vrot.lane.b32.xlu0 %v851, 2
        %v865 = vpop.permute.xlu0 %864
        %866 = vrot.lane.b32.xlu0 %v852, 2
        %v867 = vpop.permute.xlu0 %866
        %868 = vrot.lane.b32.xlu0 %v853, 2
        %v869 = vpop.permute.xlu0 %868
        %870 = vrot.lane.b32.xlu0 %v854, 2
        %v871 = vpop.permute.xlu0 %870
        %872 = vrot.lane.b32.xlu0 %v855, 2
        %v873 = vpop.permute.xlu0 %872
        %vm874 = vcmp.lt.s32.totalorder %v624, 2
        %v875 = vsel %vm874, %v871, %v873
        %v876 = vsel %vm874, %v869, %v871
        %v877 = vsel %vm874, %v867, %v869
        %v878 = vsel %vm874, %v865, %v867
        %v879 = vsel %vm874, %v863, %v865
        %v880 = vsel %vm874, %v861, %v863
        %v881 = vsel %vm874, %v859, %v861
        %v882 = vsel %vm874, %v873, %v859
        %883 = vrot.lane.b32.xlu0 %v848, 126
        %v884 = vpop.permute.xlu0 %883
        %885 = vrot.lane.b32.xlu0 %v849, 126
        %v886 = vpop.permute.xlu0 %885
        %887 = vrot.lane.b32.xlu0 %v850, 126
        %v888 = vpop.permute.xlu0 %887
        %889 = vrot.lane.b32.xlu0 %v851, 126
        %v890 = vpop.permute.xlu0 %889
        %891 = vrot.lane.b32.xlu0 %v852, 126
        %v892 = vpop.permute.xlu0 %891
        %893 = vrot.lane.b32.xlu0 %v853, 126
        %v894 = vpop.permute.xlu0 %893
        %895 = vrot.lane.b32.xlu0 %v854, 126
        %v896 = vpop.permute.xlu0 %895
        %897 = vrot.lane.b32.xlu0 %v855, 126
        %v898 = vpop.permute.xlu0 %897
        %vm899 = vcmp.lt.s32.totalorder %v624, 126
        %v900 = vsel %vm899, %v896, %v898
        %v901 = vsel %vm899, %v894, %v896
        %v902 = vsel %vm899, %v892, %v894
        %v903 = vsel %vm899, %v890, %v892
        %v904 = vsel %vm899, %v888, %v890
        %v905 = vsel %vm899, %v886, %v888
        %v906 = vsel %vm899, %v884, %v886
        %v907 = vsel %vm899, %v898, %v884
        %vm908 = vcmp.ne.s32.totalorder %v857, %v687
        %v909 = vsel %vm908, 1, 0
        %v910 = vlaneseq
        %v911 = vshrl.u32 %v910, 7
        %v912 = vsub.s32 0, %v911
        %v913 = vrot.slane %v909, %v912
        %v914 = vlaneseq
        %v915 = vshrl.u32 %v914, 7
        %v916 = vsub.s32 1, %v915
        %v917 = vrot.slane %v909, %v916
        %v918 = vlaneseq
        %v919 = vshrl.u32 %v918, 7
        %v920 = vsub.s32 2, %v919
        %v921 = vrot.slane %v909, %v920
        %v922 = vlaneseq
        %v923 = vshrl.u32 %v922, 7
        %v924 = vsub.s32 3, %v923
        %v925 = vrot.slane %v909, %v924
        %v926 = vlaneseq
        %v927 = vshrl.u32 %v926, 7
        %v928 = vsub.s32 4, %v927
        %v929 = vrot.slane %v909, %v928
        %v930 = vlaneseq
        %v931 = vshrl.u32 %v930, 7
        %v932 = vsub.s32 5, %v931
        %v933 = vrot.slane %v909, %v932
        %v934 = vlaneseq
        %v935 = vshrl.u32 %v934, 7
        %v936 = vsub.s32 6, %v935
        %v937 = vrot.slane %v909, %v936
        %v938 = vlaneseq
        %v939 = vshrl.u32 %v938, 7
        %v940 = vsub.s32 7, %v939
        %v941 = vrot.slane %v909, %v940
        %vm942 = vcmp.eq.s32.totalorder %v913, 1
        %vm943 = vcmp.eq.s32.totalorder %v917, 1
        %vm944 = vcmp.eq.s32.totalorder %v921, 1
        %vm945 = vcmp.eq.s32.totalorder %v925, 1
        %vm946 = vcmp.eq.s32.totalorder %v929, 1
        %vm947 = vcmp.eq.s32.totalorder %v933, 1
        %vm948 = vcmp.eq.s32.totalorder %v937, 1
        %vm949 = vcmp.eq.s32.totalorder %v941, 1
        %v950 = vsel %vm942, %v906, %v882
        %v951 = vsel %vm943, %v905, %v881
        %v952 = vsel %vm944, %v904, %v880
        %v953 = vsel %vm945, %v903, %v879
        %v954 = vsel %vm946, %v902, %v878
        %v955 = vsel %vm947, %v901, %v877
        %v956 = vsel %vm948, %v900, %v876
        %v957 = vsel %vm949, %v907, %v875
        %v958 = vadd.f32 %v848, %v950
        %v959 = vadd.f32 %v849, %v951
        %v960 = vadd.f32 %v850, %v952
        %v961 = vadd.f32 %v851, %v953
        %v962 = vadd.f32 %v852, %v954
        %v963 = vadd.f32 %v853, %v955
        %v964 = vadd.f32 %v854, %v956
        %v965 = vadd.f32 %v855, %v957
        %v966 = vshra.s32 %v622, 17
        %v967 = vand.u32 %v966, 1
        %968 = vrot.lane.b32.xlu0 %v958, 64
        %v969 = vpop.permute.xlu0 %968
        %970 = vrot.lane.b32.xlu0 %v959, 64
        %v971 = vpop.permute.xlu0 %970
        %972 = vrot.lane.b32.xlu0 %v960, 64
        %v973 = vpop.permute.xlu0 %972
        %974 = vrot.lane.b32.xlu0 %v961, 64
        %v975 = vpop.permute.xlu0 %974
        %976 = vrot.lane.b32.xlu0 %v962, 64
        %v977 = vpop.permute.xlu0 %976
        %978 = vrot.lane.b32.xlu0 %v963, 64
        %v979 = vpop.permute.xlu0 %978
        %980 = vrot.lane.b32.xlu0 %v964, 64
        %v981 = vpop.permute.xlu0 %980
        %982 = vrot.lane.b32.xlu0 %v965, 64
        %v983 = vpop.permute.xlu0 %982
        %vm984 = vcmp.lt.s32.totalorder %v624, 64
        %v985 = vsel %vm984, %v981, %v983
        %v986 = vsel %vm984, %v979, %v981
        %v987 = vsel %vm984, %v977, %v979
        %v988 = vsel %vm984, %v975, %v977
        %v989 = vsel %vm984, %v973, %v975
        %v990 = vsel %vm984, %v971, %v973
        %v991 = vsel %vm984, %v969, %v971
        %v992 = vsel %vm984, %v983, %v969
        %vm993 = vcmp.ne.s32.totalorder %v967, %v687
        %v994 = vsel %vm993, 1, 0
        %v995 = vlaneseq
        %v996 = vshrl.u32 %v995, 7
        %v997 = vsub.s32 0, %v996
        %v998 = vrot.slane %v994, %v997
        %v999 = vlaneseq
        %v1000 = vshrl.u32 %v999, 7
        %v1001 = vsub.s32 1, %v1000
        %v1002 = vrot.slane %v994, %v1001
        %v1003 = vlaneseq
        %v1004 = vshrl.u32 %v1003, 7
        %v1005 = vsub.s32 2, %v1004
        %v1006 = vrot.slane %v994, %v1005
        %v1007 = vlaneseq
        %v1008 = vshrl.u32 %v1007, 7
        %v1009 = vsub.s32 3, %v1008
        %v1010 = vrot.slane %v994, %v1009
        %v1011 = vlaneseq
        %v1012 = vshrl.u32 %v1011, 7
        %v1013 = vsub.s32 4, %v1012
        %v1014 = vrot.slane %v994, %v1013
        %v1015 = vlaneseq
        %v1016 = vshrl.u32 %v1015, 7
        %v1017 = vsub.s32 5, %v1016
        %v1018 = vrot.slane %v994, %v1017
        %v1019 = vlaneseq
        %v1020 = vshrl.u32 %v1019, 7
        %v1021 = vsub.s32 6, %v1020
        %v1022 = vrot.slane %v994, %v1021
        %v1023 = vlaneseq
        %v1024 = vshrl.u32 %v1023, 7
        %v1025 = vsub.s32 7, %v1024
        %v1026 = vrot.slane %v994, %v1025
        %vm1027 = vcmp.eq.s32.totalorder %v998, 1
        %vm1028 = vcmp.eq.s32.totalorder %v1002, 1
        %vm1029 = vcmp.eq.s32.totalorder %v1006, 1
        %vm1030 = vcmp.eq.s32.totalorder %v1010, 1
        %vm1031 = vcmp.eq.s32.totalorder %v1014, 1
        %vm1032 = vcmp.eq.s32.totalorder %v1018, 1
        %vm1033 = vcmp.eq.s32.totalorder %v1022, 1
        %vm1034 = vcmp.eq.s32.totalorder %v1026, 1
        %v1035 = vsel %vm1027, %v991, %v992
        %v1036 = vsel %vm1028, %v990, %v991
        %v1037 = vsel %vm1029, %v989, %v990
        %v1038 = vsel %vm1030, %v988, %v989
        %v1039 = vsel %vm1031, %v987, %v988
        %v1040 = vsel %vm1032, %v986, %v987
        %v1041 = vsel %vm1033, %v985, %v986
        %v1042 = vsel %vm1034, %v992, %v985
        %v1043 = vadd.f32 %v958, %v1035
        %v1044 = vadd.f32 %v959, %v1036
        %v1045 = vadd.f32 %v960, %v1037
        %v1046 = vadd.f32 %v961, %v1038
        %v1047 = vadd.f32 %v962, %v1039
        %v1048 = vadd.f32 %v963, %v1040
        %v1049 = vadd.f32 %v964, %v1041
        %v1050 = vadd.f32 %v965, %v1042
        %vm1051 = vcmp.ge.f32.partialorder %v1043, 0.0
        %vm1052 = vcmp.ge.f32.partialorder %v1044, 0.0
        %vm1053 = vcmp.ge.f32.partialorder %v1045, 0.0
        %vm1054 = vcmp.ge.f32.partialorder %v1046, 0.0
        %vm1055 = vcmp.ge.f32.partialorder %v1047, 0.0
        %vm1056 = vcmp.ge.f32.partialorder %v1048, 0.0
        %vm1057 = vcmp.ge.f32.partialorder %v1049, 0.0
        %vm1058 = vcmp.ge.f32.partialorder %v1050, 0.0
        %v1059 = vmul.f32 %v1043, 0.2
        %v1060 = vmul.f32 %v1044, 0.2
        %v1061 = vmul.f32 %v1045, 0.2
        %v1062 = vmul.f32 %v1046, 0.2
        %v1063 = vmul.f32 %v1047, 0.2
        %v1064 = vmul.f32 %v1048, 0.2
        %v1065 = vmul.f32 %v1049, 0.2
        %v1066 = vmul.f32 %v1050, 0.2
        %v1067 = vsel %vm1051, %v1043, %v1059
        %v1068 = vsel %vm1052, %v1044, %v1060
        %v1069 = vsel %vm1053, %v1045, %v1061
        %v1070 = vsel %vm1054, %v1046, %v1062
        %v1071 = vsel %vm1055, %v1047, %v1063
        %v1072 = vsel %vm1056, %v1048, %v1064
        %v1073 = vsel %vm1057, %v1049, %v1065
        %v1074 = vsel %vm1058, %v1050, %v1066
        %1076 = vset.pattern.permute.xlu0 0
        %1077 = vperm.xlu0 %1076, %v621
        %v1078 = vpop.permute.xlu0 %1077
        %v1080 = vlaneseq
        %v1081 = vshrl.u32 %v1080, 7
        %v1082 = vsub.s32 0, %v1081
        %v1083 = vrot.slane %v1067, %v1082
        %v1084 = vlaneseq
        %v1085 = vshrl.u32 %v1084, 7
        %v1086 = vsub.s32 0, %v1085
        %v1087 = vrot.slane %v1068, %v1086
        %v1088 = vlaneseq
        %v1089 = vshrl.u32 %v1088, 7
        %v1090 = vsub.s32 0, %v1089
        %v1091 = vrot.slane %v1069, %v1090
        %v1092 = vlaneseq
        %v1093 = vshrl.u32 %v1092, 7
        %v1094 = vsub.s32 0, %v1093
        %v1095 = vrot.slane %v1070, %v1094
        %v1096 = vlaneseq
        %v1097 = vshrl.u32 %v1096, 7
        %v1098 = vsub.s32 0, %v1097
        %v1099 = vrot.slane %v1071, %v1098
        %v1100 = vlaneseq
        %v1101 = vshrl.u32 %v1100, 7
        %v1102 = vsub.s32 0, %v1101
        %v1103 = vrot.slane %v1072, %v1102
        %v1104 = vlaneseq
        %v1105 = vshrl.u32 %v1104, 7
        %v1106 = vsub.s32 0, %v1105
        %v1107 = vrot.slane %v1073, %v1106
        %v1108 = vlaneseq
        %v1109 = vshrl.u32 %v1108, 7
        %v1110 = vsub.s32 0, %v1109
        %v1111 = vrot.slane %v1074, %v1110
        %v1112 = vmul.f32 %v1078, %v1083
        %v1113 = vmul.f32 %v1078, %v1087
        %v1114 = vmul.f32 %v1078, %v1091
        %v1115 = vmul.f32 %v1078, %v1095
        %v1116 = vmul.f32 %v1078, %v1099
        %v1117 = vmul.f32 %v1078, %v1103
        %v1118 = vmul.f32 %v1078, %v1107
        %v1119 = vmul.f32 %v1078, %v1111
        %v1120 = vadd.f32 %v613, %v1112
        %v1121 = vadd.f32 %v614, %v1113
        %v1122 = vadd.f32 %v615, %v1114
        %v1123 = vadd.f32 %v616, %v1115
        %v1124 = vadd.f32 %v617, %v1116
        %v1125 = vadd.f32 %v618, %v1117
        %v1126 = vadd.f32 %v619, %v1118
        %v1127 = vadd.f32 %v620, %v1119
        %v1128 = vshra.s32 %v622, 2
        %v1129 = vand.u32 %v1128, 1
        %1130 = vrot.lane.b32.xlu0 %v1043, 4
        %v1131 = vpop.permute.xlu0 %1130
        %1132 = vrot.lane.b32.xlu0 %v1044, 4
        %v1133 = vpop.permute.xlu0 %1132
        %1134 = vrot.lane.b32.xlu0 %v1045, 4
        %v1135 = vpop.permute.xlu0 %1134
        %1136 = vrot.lane.b32.xlu0 %v1046, 4
        %v1137 = vpop.permute.xlu0 %1136
        %1138 = vrot.lane.b32.xlu0 %v1047, 4
        %v1139 = vpop.permute.xlu0 %1138
        %1140 = vrot.lane.b32.xlu0 %v1048, 4
        %v1141 = vpop.permute.xlu0 %1140
        %1142 = vrot.lane.b32.xlu0 %v1049, 4
        %v1143 = vpop.permute.xlu0 %1142
        %1144 = vrot.lane.b32.xlu0 %v1050, 4
        %v1145 = vpop.permute.xlu0 %1144
        %vm1146 = vcmp.lt.s32.totalorder %v624, 4
        %v1147 = vsel %vm1146, %v1143, %v1145
        %v1148 = vsel %vm1146, %v1141, %v1143
        %v1149 = vsel %vm1146, %v1139, %v1141
        %v1150 = vsel %vm1146, %v1137, %v1139
        %v1151 = vsel %vm1146, %v1135, %v1137
        %v1152 = vsel %vm1146, %v1133, %v1135
        %v1153 = vsel %vm1146, %v1131, %v1133
        %v1154 = vsel %vm1146, %v1145, %v1131
        %1155 = vrot.lane.b32.xlu0 %v1043, 124
        %v1156 = vpop.permute.xlu0 %1155
        %1157 = vrot.lane.b32.xlu0 %v1044, 124
        %v1158 = vpop.permute.xlu0 %1157
        %1159 = vrot.lane.b32.xlu0 %v1045, 124
        %v1160 = vpop.permute.xlu0 %1159
        %1161 = vrot.lane.b32.xlu0 %v1046, 124
        %v1162 = vpop.permute.xlu0 %1161
        %1163 = vrot.lane.b32.xlu0 %v1047, 124
        %v1164 = vpop.permute.xlu0 %1163
        %1165 = vrot.lane.b32.xlu0 %v1048, 124
        %v1166 = vpop.permute.xlu0 %1165
        %1167 = vrot.lane.b32.xlu0 %v1049, 124
        %v1168 = vpop.permute.xlu0 %1167
        %1169 = vrot.lane.b32.xlu0 %v1050, 124
        %v1170 = vpop.permute.xlu0 %1169
        %vm1171 = vcmp.lt.s32.totalorder %v624, 124
        %v1172 = vsel %vm1171, %v1168, %v1170
        %v1173 = vsel %vm1171, %v1166, %v1168
        %v1174 = vsel %vm1171, %v1164, %v1166
        %v1175 = vsel %vm1171, %v1162, %v1164
        %v1176 = vsel %vm1171, %v1160, %v1162
        %v1177 = vsel %vm1171, %v1158, %v1160
        %v1178 = vsel %vm1171, %v1156, %v1158
        %v1179 = vsel %vm1171, %v1170, %v1156
        %vm1180 = vcmp.ne.s32.totalorder %v1129, %v687
        %v1181 = vsel %vm1180, 1, 0
        %v1182 = vlaneseq
        %v1183 = vshrl.u32 %v1182, 7
        %v1184 = vsub.s32 0, %v1183
        %v1185 = vrot.slane %v1181, %v1184
        %v1186 = vlaneseq
        %v1187 = vshrl.u32 %v1186, 7
        %v1188 = vsub.s32 1, %v1187
        %v1189 = vrot.slane %v1181, %v1188
        %v1190 = vlaneseq
        %v1191 = vshrl.u32 %v1190, 7
        %v1192 = vsub.s32 2, %v1191
        %v1193 = vrot.slane %v1181, %v1192
        %v1194 = vlaneseq
        %v1195 = vshrl.u32 %v1194, 7
        %v1196 = vsub.s32 3, %v1195
        %v1197 = vrot.slane %v1181, %v1196
        %v1198 = vlaneseq
        %v1199 = vshrl.u32 %v1198, 7
        %v1200 = vsub.s32 4, %v1199
        %v1201 = vrot.slane %v1181, %v1200
        %v1202 = vlaneseq
        %v1203 = vshrl.u32 %v1202, 7
        %v1204 = vsub.s32 5, %v1203
        %v1205 = vrot.slane %v1181, %v1204
        %v1206 = vlaneseq
        %v1207 = vshrl.u32 %v1206, 7
        %v1208 = vsub.s32 6, %v1207
        %v1209 = vrot.slane %v1181, %v1208
        %v1210 = vlaneseq
        %v1211 = vshrl.u32 %v1210, 7
        %v1212 = vsub.s32 7, %v1211
        %v1213 = vrot.slane %v1181, %v1212
        %vm1214 = vcmp.eq.s32.totalorder %v1185, 1
        %vm1215 = vcmp.eq.s32.totalorder %v1189, 1
        %vm1216 = vcmp.eq.s32.totalorder %v1193, 1
        %vm1217 = vcmp.eq.s32.totalorder %v1197, 1
        %vm1218 = vcmp.eq.s32.totalorder %v1201, 1
        %vm1219 = vcmp.eq.s32.totalorder %v1205, 1
        %vm1220 = vcmp.eq.s32.totalorder %v1209, 1
        %vm1221 = vcmp.eq.s32.totalorder %v1213, 1
        %v1222 = vsel %vm1214, %v1178, %v1154
        %v1223 = vsel %vm1215, %v1177, %v1153
        %v1224 = vsel %vm1216, %v1176, %v1152
        %v1225 = vsel %vm1217, %v1175, %v1151
        %v1226 = vsel %vm1218, %v1174, %v1150
        %v1227 = vsel %vm1219, %v1173, %v1149
        %v1228 = vsel %vm1220, %v1172, %v1148
        %v1229 = vsel %vm1221, %v1179, %v1147
        %v1230 = vadd.f32 %v1043, %v1222
        %v1231 = vadd.f32 %v1044, %v1223
        %v1232 = vadd.f32 %v1045, %v1224
        %v1233 = vadd.f32 %v1046, %v1225
        %v1234 = vadd.f32 %v1047, %v1226
        %v1235 = vadd.f32 %v1048, %v1227
        %v1236 = vadd.f32 %v1049, %v1228
        %v1237 = vadd.f32 %v1050, %v1229
        %v1238 = vshra.s32 %v622, 18
        %v1239 = vand.u32 %v1238, 1
        %vm1240 = vcmp.ne.s32.totalorder %v1239, %v687
        %v1241 = vsel %vm1240, 1, 0
        %v1242 = vlaneseq
        %v1243 = vshrl.u32 %v1242, 7
        %v1244 = vsub.s32 0, %v1243
        %v1245 = vrot.slane %v1241, %v1244
        %v1246 = vlaneseq
        %v1247 = vshrl.u32 %v1246, 7
        %v1248 = vsub.s32 1, %v1247
        %v1249 = vrot.slane %v1241, %v1248
        %v1250 = vlaneseq
        %v1251 = vshrl.u32 %v1250, 7
        %v1252 = vsub.s32 2, %v1251
        %v1253 = vrot.slane %v1241, %v1252
        %v1254 = vlaneseq
        %v1255 = vshrl.u32 %v1254, 7
        %v1256 = vsub.s32 3, %v1255
        %v1257 = vrot.slane %v1241, %v1256
        %v1258 = vlaneseq
        %v1259 = vshrl.u32 %v1258, 7
        %v1260 = vsub.s32 4, %v1259
        %v1261 = vrot.slane %v1241, %v1260
        %v1262 = vlaneseq
        %v1263 = vshrl.u32 %v1262, 7
        %v1264 = vsub.s32 5, %v1263
        %v1265 = vrot.slane %v1241, %v1264
        %v1266 = vlaneseq
        %v1267 = vshrl.u32 %v1266, 7
        %v1268 = vsub.s32 6, %v1267
        %v1269 = vrot.slane %v1241, %v1268
        %v1270 = vlaneseq
        %v1271 = vshrl.u32 %v1270, 7
        %v1272 = vsub.s32 7, %v1271
        %v1273 = vrot.slane %v1241, %v1272
        %vm1274 = vcmp.eq.s32.totalorder %v1245, 1
        %vm1275 = vcmp.eq.s32.totalorder %v1249, 1
        %vm1276 = vcmp.eq.s32.totalorder %v1253, 1
        %vm1277 = vcmp.eq.s32.totalorder %v1257, 1
        %vm1278 = vcmp.eq.s32.totalorder %v1261, 1
        %vm1279 = vcmp.eq.s32.totalorder %v1265, 1
        %vm1280 = vcmp.eq.s32.totalorder %v1269, 1
        %vm1281 = vcmp.eq.s32.totalorder %v1273, 1
        %v1282 = vsel %vm1274, %v1231, %v1237
        %v1283 = vsel %vm1275, %v1232, %v1230
        %v1284 = vsel %vm1276, %v1233, %v1231
        %v1285 = vsel %vm1277, %v1234, %v1232
        %v1286 = vsel %vm1278, %v1235, %v1233
        %v1287 = vsel %vm1279, %v1236, %v1234
        %v1288 = vsel %vm1280, %v1237, %v1235
        %v1289 = vsel %vm1281, %v1230, %v1236
        %v1290 = vadd.f32 %v1230, %v1282
        %v1291 = vadd.f32 %v1231, %v1283
        %v1292 = vadd.f32 %v1232, %v1284
        %v1293 = vadd.f32 %v1233, %v1285
        %v1294 = vadd.f32 %v1234, %v1286
        %v1295 = vadd.f32 %v1235, %v1287
        %v1296 = vadd.f32 %v1236, %v1288
        %v1297 = vadd.f32 %v1237, %v1289
        %vm1298 = vcmp.ge.f32.partialorder %v1290, 0.0
        %vm1299 = vcmp.ge.f32.partialorder %v1291, 0.0
        %vm1300 = vcmp.ge.f32.partialorder %v1292, 0.0
        %vm1301 = vcmp.ge.f32.partialorder %v1293, 0.0
        %vm1302 = vcmp.ge.f32.partialorder %v1294, 0.0
        %vm1303 = vcmp.ge.f32.partialorder %v1295, 0.0
        %vm1304 = vcmp.ge.f32.partialorder %v1296, 0.0
        %vm1305 = vcmp.ge.f32.partialorder %v1297, 0.0
        %v1306 = vmul.f32 %v1290, 0.2
        %v1307 = vmul.f32 %v1291, 0.2
        %v1308 = vmul.f32 %v1292, 0.2
        %v1309 = vmul.f32 %v1293, 0.2
        %v1310 = vmul.f32 %v1294, 0.2
        %v1311 = vmul.f32 %v1295, 0.2
        %v1312 = vmul.f32 %v1296, 0.2
        %v1313 = vmul.f32 %v1297, 0.2
        %v1314 = vsel %vm1298, %v1290, %v1306
        %v1315 = vsel %vm1299, %v1291, %v1307
        %v1316 = vsel %vm1300, %v1292, %v1308
        %v1317 = vsel %vm1301, %v1293, %v1309
        %v1318 = vsel %vm1302, %v1294, %v1310
        %v1319 = vsel %vm1303, %v1295, %v1311
        %v1320 = vsel %vm1304, %v1296, %v1312
        %v1321 = vsel %vm1305, %v1297, %v1313
        %1322 = vset.pattern.permute.xlu0 1
        %1323 = vperm.xlu0 %1322, %v621
        %v1324 = vpop.permute.xlu0 %1323
        %v1326 = vlaneseq
        %v1327 = vshrl.u32 %v1326, 7
        %v1328 = vsub.s32 1, %v1327
        %v1329 = vrot.slane %v1314, %v1328
        %v1330 = vlaneseq
        %v1331 = vshrl.u32 %v1330, 7
        %v1332 = vsub.s32 1, %v1331
        %v1333 = vrot.slane %v1315, %v1332
        %v1334 = vlaneseq
        %v1335 = vshrl.u32 %v1334, 7
        %v1336 = vsub.s32 1, %v1335
        %v1337 = vrot.slane %v1316, %v1336
        %v1338 = vlaneseq
        %v1339 = vshrl.u32 %v1338, 7
        %v1340 = vsub.s32 1, %v1339
        %v1341 = vrot.slane %v1317, %v1340
        %v1342 = vlaneseq
        %v1343 = vshrl.u32 %v1342, 7
        %v1344 = vsub.s32 1, %v1343
        %v1345 = vrot.slane %v1318, %v1344
        %v1346 = vlaneseq
        %v1347 = vshrl.u32 %v1346, 7
        %v1348 = vsub.s32 1, %v1347
        %v1349 = vrot.slane %v1319, %v1348
        %v1350 = vlaneseq
        %v1351 = vshrl.u32 %v1350, 7
        %v1352 = vsub.s32 1, %v1351
        %v1353 = vrot.slane %v1320, %v1352
        %v1354 = vlaneseq
        %v1355 = vshrl.u32 %v1354, 7
        %v1356 = vsub.s32 1, %v1355
        %v1357 = vrot.slane %v1321, %v1356
        %v1358 = vmul.f32 %v1324, %v1329
        %v1359 = vmul.f32 %v1324, %v1333
        %v1360 = vmul.f32 %v1324, %v1337
        %v1361 = vmul.f32 %v1324, %v1341
        %v1362 = vmul.f32 %v1324, %v1345
        %v1363 = vmul.f32 %v1324, %v1349
        %v1364 = vmul.f32 %v1324, %v1353
        %v1365 = vmul.f32 %v1324, %v1357
        %v1366 = vadd.f32 %v1120, %v1358
        %v1367 = vadd.f32 %v1121, %v1359
        %v1368 = vadd.f32 %v1122, %v1360
        %v1369 = vadd.f32 %v1123, %v1361
        %v1370 = vadd.f32 %v1124, %v1362
        %v1371 = vadd.f32 %v1125, %v1363
        %v1372 = vadd.f32 %v1126, %v1364
        %v1373 = vadd.f32 %v1127, %v1365
        %v1374 = vshra.s32 %v622, 3
        %v1375 = vand.u32 %v1374, 1
        %1376 = vrot.lane.b32.xlu0 %v1290, 8
        %v1377 = vpop.permute.xlu0 %1376
        %1378 = vrot.lane.b32.xlu0 %v1291, 8
        %v1379 = vpop.permute.xlu0 %1378
        %1380 = vrot.lane.b32.xlu0 %v1292, 8
        %v1381 = vpop.permute.xlu0 %1380
        %1382 = vrot.lane.b32.xlu0 %v1293, 8
        %v1383 = vpop.permute.xlu0 %1382
        %1384 = vrot.lane.b32.xlu0 %v1294, 8
        %v1385 = vpop.permute.xlu0 %1384
        %1386 = vrot.lane.b32.xlu0 %v1295, 8
        %v1387 = vpop.permute.xlu0 %1386
        %1388 = vrot.lane.b32.xlu0 %v1296, 8
        %v1389 = vpop.permute.xlu0 %1388
        %1390 = vrot.lane.b32.xlu0 %v1297, 8
        %v1391 = vpop.permute.xlu0 %1390
        %vm1392 = vcmp.lt.s32.totalorder %v624, 8
        %v1393 = vsel %vm1392, %v1389, %v1391
        %v1394 = vsel %vm1392, %v1387, %v1389
        %v1395 = vsel %vm1392, %v1385, %v1387
        %v1396 = vsel %vm1392, %v1383, %v1385
        %v1397 = vsel %vm1392, %v1381, %v1383
        %v1398 = vsel %vm1392, %v1379, %v1381
        %v1399 = vsel %vm1392, %v1377, %v1379
        %v1400 = vsel %vm1392, %v1391, %v1377
        %1401 = vrot.lane.b32.xlu0 %v1290, 120
        %v1402 = vpop.permute.xlu0 %1401
        %1403 = vrot.lane.b32.xlu0 %v1291, 120
        %v1404 = vpop.permute.xlu0 %1403
        %1405 = vrot.lane.b32.xlu0 %v1292, 120
        %v1406 = vpop.permute.xlu0 %1405
        %1407 = vrot.lane.b32.xlu0 %v1293, 120
        %v1408 = vpop.permute.xlu0 %1407
        %1409 = vrot.lane.b32.xlu0 %v1294, 120
        %v1410 = vpop.permute.xlu0 %1409
        %1411 = vrot.lane.b32.xlu0 %v1295, 120
        %v1412 = vpop.permute.xlu0 %1411
        %1413 = vrot.lane.b32.xlu0 %v1296, 120
        %v1414 = vpop.permute.xlu0 %1413
        %1415 = vrot.lane.b32.xlu0 %v1297, 120
        %v1416 = vpop.permute.xlu0 %1415
        %vm1417 = vcmp.lt.s32.totalorder %v624, 120
        %v1418 = vsel %vm1417, %v1414, %v1416
        %v1419 = vsel %vm1417, %v1412, %v1414
        %v1420 = vsel %vm1417, %v1410, %v1412
        %v1421 = vsel %vm1417, %v1408, %v1410
        %v1422 = vsel %vm1417, %v1406, %v1408
        %v1423 = vsel %vm1417, %v1404, %v1406
        %v1424 = vsel %vm1417, %v1402, %v1404
        %v1425 = vsel %vm1417, %v1416, %v1402
        %vm1426 = vcmp.ne.s32.totalorder %v1375, %v687
        %v1427 = vsel %vm1426, 1, 0
        %v1428 = vlaneseq
        %v1429 = vshrl.u32 %v1428, 7
        %v1430 = vsub.s32 0, %v1429
        %v1431 = vrot.slane %v1427, %v1430
        %v1432 = vlaneseq
        %v1433 = vshrl.u32 %v1432, 7
        %v1434 = vsub.s32 1, %v1433
        %v1435 = vrot.slane %v1427, %v1434
        %v1436 = vlaneseq
        %v1437 = vshrl.u32 %v1436, 7
        %v1438 = vsub.s32 2, %v1437
        %v1439 = vrot.slane %v1427, %v1438
        %v1440 = vlaneseq
        %v1441 = vshrl.u32 %v1440, 7
        %v1442 = vsub.s32 3, %v1441
        %v1443 = vrot.slane %v1427, %v1442
        %v1444 = vlaneseq
        %v1445 = vshrl.u32 %v1444, 7
        %v1446 = vsub.s32 4, %v1445
        %v1447 = vrot.slane %v1427, %v1446
        %v1448 = vlaneseq
        %v1449 = vshrl.u32 %v1448, 7
        %v1450 = vsub.s32 5, %v1449
        %v1451 = vrot.slane %v1427, %v1450
        %v1452 = vlaneseq
        %v1453 = vshrl.u32 %v1452, 7
        %v1454 = vsub.s32 6, %v1453
        %v1455 = vrot.slane %v1427, %v1454
        %v1456 = vlaneseq
        %v1457 = vshrl.u32 %v1456, 7
        %v1458 = vsub.s32 7, %v1457
        %v1459 = vrot.slane %v1427, %v1458
        %vm1460 = vcmp.eq.s32.totalorder %v1431, 1
        %vm1461 = vcmp.eq.s32.totalorder %v1435, 1
        %vm1462 = vcmp.eq.s32.totalorder %v1439, 1
        %vm1463 = vcmp.eq.s32.totalorder %v1443, 1
        %vm1464 = vcmp.eq.s32.totalorder %v1447, 1
        %vm1465 = vcmp.eq.s32.totalorder %v1451, 1
        %vm1466 = vcmp.eq.s32.totalorder %v1455, 1
        %vm1467 = vcmp.eq.s32.totalorder %v1459, 1
        %v1468 = vsel %vm1460, %v1424, %v1400
        %v1469 = vsel %vm1461, %v1423, %v1399
        %v1470 = vsel %vm1462, %v1422, %v1398
        %v1471 = vsel %vm1463, %v1421, %v1397
        %v1472 = vsel %vm1464, %v1420, %v1396
        %v1473 = vsel %vm1465, %v1419, %v1395
        %v1474 = vsel %vm1466, %v1418, %v1394
        %v1475 = vsel %vm1467, %v1425, %v1393
        %v1476 = vadd.f32 %v1290, %v1468
        %v1477 = vadd.f32 %v1291, %v1469
        %v1478 = vadd.f32 %v1292, %v1470
        %v1479 = vadd.f32 %v1293, %v1471
        %v1480 = vadd.f32 %v1294, %v1472
        %v1481 = vadd.f32 %v1295, %v1473
        %v1482 = vadd.f32 %v1296, %v1474
        %v1483 = vadd.f32 %v1297, %v1475
        %v1484 = vshra.s32 %v622, 19
        %v1485 = vand.u32 %v1484, 1
        %vm1486 = vcmp.ne.s32.totalorder %v1485, %v687
        %v1487 = vsel %vm1486, 1, 0
        %v1488 = vlaneseq
        %v1489 = vshrl.u32 %v1488, 7
        %v1490 = vsub.s32 0, %v1489
        %v1491 = vrot.slane %v1487, %v1490
        %v1492 = vlaneseq
        %v1493 = vshrl.u32 %v1492, 7
        %v1494 = vsub.s32 1, %v1493
        %v1495 = vrot.slane %v1487, %v1494
        %v1496 = vlaneseq
        %v1497 = vshrl.u32 %v1496, 7
        %v1498 = vsub.s32 2, %v1497
        %v1499 = vrot.slane %v1487, %v1498
        %v1500 = vlaneseq
        %v1501 = vshrl.u32 %v1500, 7
        %v1502 = vsub.s32 3, %v1501
        %v1503 = vrot.slane %v1487, %v1502
        %v1504 = vlaneseq
        %v1505 = vshrl.u32 %v1504, 7
        %v1506 = vsub.s32 4, %v1505
        %v1507 = vrot.slane %v1487, %v1506
        %v1508 = vlaneseq
        %v1509 = vshrl.u32 %v1508, 7
        %v1510 = vsub.s32 5, %v1509
        %v1511 = vrot.slane %v1487, %v1510
        %v1512 = vlaneseq
        %v1513 = vshrl.u32 %v1512, 7
        %v1514 = vsub.s32 6, %v1513
        %v1515 = vrot.slane %v1487, %v1514
        %v1516 = vlaneseq
        %v1517 = vshrl.u32 %v1516, 7
        %v1518 = vsub.s32 7, %v1517
        %v1519 = vrot.slane %v1487, %v1518
        %vm1520 = vcmp.eq.s32.totalorder %v1491, 1
        %vm1521 = vcmp.eq.s32.totalorder %v1495, 1
        %vm1522 = vcmp.eq.s32.totalorder %v1499, 1
        %vm1523 = vcmp.eq.s32.totalorder %v1503, 1
        %vm1524 = vcmp.eq.s32.totalorder %v1507, 1
        %vm1525 = vcmp.eq.s32.totalorder %v1511, 1
        %vm1526 = vcmp.eq.s32.totalorder %v1515, 1
        %vm1527 = vcmp.eq.s32.totalorder %v1519, 1
        %v1528 = vsel %vm1520, %v1478, %v1482
        %v1529 = vsel %vm1521, %v1479, %v1483
        %v1530 = vsel %vm1522, %v1480, %v1476
        %v1531 = vsel %vm1523, %v1481, %v1477
        %v1532 = vsel %vm1524, %v1482, %v1478
        %v1533 = vsel %vm1525, %v1483, %v1479
        %v1534 = vsel %vm1526, %v1476, %v1480
        %v1535 = vsel %vm1527, %v1477, %v1481
        %v1536 = vadd.f32 %v1476, %v1528
        %v1537 = vadd.f32 %v1477, %v1529
        %v1538 = vadd.f32 %v1478, %v1530
        %v1539 = vadd.f32 %v1479, %v1531
        %v1540 = vadd.f32 %v1480, %v1532
        %v1541 = vadd.f32 %v1481, %v1533
        %v1542 = vadd.f32 %v1482, %v1534
        %v1543 = vadd.f32 %v1483, %v1535
        %vm1544 = vcmp.ge.f32.partialorder %v1536, 0.0
        %vm1545 = vcmp.ge.f32.partialorder %v1537, 0.0
        %vm1546 = vcmp.ge.f32.partialorder %v1538, 0.0
        %vm1547 = vcmp.ge.f32.partialorder %v1539, 0.0
        %vm1548 = vcmp.ge.f32.partialorder %v1540, 0.0
        %vm1549 = vcmp.ge.f32.partialorder %v1541, 0.0
        %vm1550 = vcmp.ge.f32.partialorder %v1542, 0.0
        %vm1551 = vcmp.ge.f32.partialorder %v1543, 0.0
        %v1552 = vmul.f32 %v1536, 0.2
        %v1553 = vmul.f32 %v1537, 0.2
        %v1554 = vmul.f32 %v1538, 0.2
        %v1555 = vmul.f32 %v1539, 0.2
        %v1556 = vmul.f32 %v1540, 0.2
        %v1557 = vmul.f32 %v1541, 0.2
        %v1558 = vmul.f32 %v1542, 0.2
        %v1559 = vmul.f32 %v1543, 0.2
        %v1560 = vsel %vm1544, %v1536, %v1552
        %v1561 = vsel %vm1545, %v1537, %v1553
        %v1562 = vsel %vm1546, %v1538, %v1554
        %v1563 = vsel %vm1547, %v1539, %v1555
        %v1564 = vsel %vm1548, %v1540, %v1556
        %v1565 = vsel %vm1549, %v1541, %v1557
        %v1566 = vsel %vm1550, %v1542, %v1558
        %v1567 = vsel %vm1551, %v1543, %v1559
        %1568 = vset.pattern.permute.xlu0 2
        %1569 = vperm.xlu0 %1568, %v621
        %v1570 = vpop.permute.xlu0 %1569
        %v1572 = vlaneseq
        %v1573 = vshrl.u32 %v1572, 7
        %v1574 = vsub.s32 2, %v1573
        %v1575 = vrot.slane %v1560, %v1574
        %v1576 = vlaneseq
        %v1577 = vshrl.u32 %v1576, 7
        %v1578 = vsub.s32 2, %v1577
        %v1579 = vrot.slane %v1561, %v1578
        %v1580 = vlaneseq
        %v1581 = vshrl.u32 %v1580, 7
        %v1582 = vsub.s32 2, %v1581
        %v1583 = vrot.slane %v1562, %v1582
        %v1584 = vlaneseq
        %v1585 = vshrl.u32 %v1584, 7
        %v1586 = vsub.s32 2, %v1585
        %v1587 = vrot.slane %v1563, %v1586
        %v1588 = vlaneseq
        %v1589 = vshrl.u32 %v1588, 7
        %v1590 = vsub.s32 2, %v1589
        %v1591 = vrot.slane %v1564, %v1590
        %v1592 = vlaneseq
        %v1593 = vshrl.u32 %v1592, 7
        %v1594 = vsub.s32 2, %v1593
        %v1595 = vrot.slane %v1565, %v1594
        %v1596 = vlaneseq
        %v1597 = vshrl.u32 %v1596, 7
        %v1598 = vsub.s32 2, %v1597
        %v1599 = vrot.slane %v1566, %v1598
        %v1600 = vlaneseq
        %v1601 = vshrl.u32 %v1600, 7
        %v1602 = vsub.s32 2, %v1601
        %v1603 = vrot.slane %v1567, %v1602
        %v1604 = vmul.f32 %v1570, %v1575
        %v1605 = vmul.f32 %v1570, %v1579
        %v1606 = vmul.f32 %v1570, %v1583
        %v1607 = vmul.f32 %v1570, %v1587
        %v1608 = vmul.f32 %v1570, %v1591
        %v1609 = vmul.f32 %v1570, %v1595
        %v1610 = vmul.f32 %v1570, %v1599
        %v1611 = vmul.f32 %v1570, %v1603
        %v1612 = vadd.f32 %v1366, %v1604
        %v1613 = vadd.f32 %v1367, %v1605
        %v1614 = vadd.f32 %v1368, %v1606
        %v1615 = vadd.f32 %v1369, %v1607
        %v1616 = vadd.f32 %v1370, %v1608
        %v1617 = vadd.f32 %v1371, %v1609
        %v1618 = vadd.f32 %v1372, %v1610
        %v1619 = vadd.f32 %v1373, %v1611
        %v1620 = vshra.s32 %v622, 4
        %v1621 = vand.u32 %v1620, 1
        %1622 = vrot.lane.b32.xlu0 %v1536, 16
        %v1623 = vpop.permute.xlu0 %1622
        %1624 = vrot.lane.b32.xlu0 %v1537, 16
        %v1625 = vpop.permute.xlu0 %1624
        %1626 = vrot.lane.b32.xlu0 %v1538, 16
        %v1627 = vpop.permute.xlu0 %1626
        %1628 = vrot.lane.b32.xlu0 %v1539, 16
        %v1629 = vpop.permute.xlu0 %1628
        %1630 = vrot.lane.b32.xlu0 %v1540, 16
        %v1631 = vpop.permute.xlu0 %1630
        %1632 = vrot.lane.b32.xlu0 %v1541, 16
        %v1633 = vpop.permute.xlu0 %1632
        %1634 = vrot.lane.b32.xlu0 %v1542, 16
        %v1635 = vpop.permute.xlu0 %1634
        %1636 = vrot.lane.b32.xlu0 %v1543, 16
        %v1637 = vpop.permute.xlu0 %1636
        %vm1638 = vcmp.lt.s32.totalorder %v624, 16
        %v1639 = vsel %vm1638, %v1635, %v1637
        %v1640 = vsel %vm1638, %v1633, %v1635
        %v1641 = vsel %vm1638, %v1631, %v1633
        %v1642 = vsel %vm1638, %v1629, %v1631
        %v1643 = vsel %vm1638, %v1627, %v1629
        %v1644 = vsel %vm1638, %v1625, %v1627
        %v1645 = vsel %vm1638, %v1623, %v1625
        %v1646 = vsel %vm1638, %v1637, %v1623
        %1647 = vrot.lane.b32.xlu0 %v1536, 112
        %v1648 = vpop.permute.xlu0 %1647
        %1649 = vrot.lane.b32.xlu0 %v1537, 112
        %v1650 = vpop.permute.xlu0 %1649
        %1651 = vrot.lane.b32.xlu0 %v1538, 112
        %v1652 = vpop.permute.xlu0 %1651
        %1653 = vrot.lane.b32.xlu0 %v1539, 112
        %v1654 = vpop.permute.xlu0 %1653
        %1655 = vrot.lane.b32.xlu0 %v1540, 112
        %v1656 = vpop.permute.xlu0 %1655
        %1657 = vrot.lane.b32.xlu0 %v1541, 112
        %v1658 = vpop.permute.xlu0 %1657
        %1659 = vrot.lane.b32.xlu0 %v1542, 112
        %v1660 = vpop.permute.xlu0 %1659
        %1661 = vrot.lane.b32.xlu0 %v1543, 112
        %v1662 = vpop.permute.xlu0 %1661
        %vm1663 = vcmp.lt.s32.totalorder %v624, 112
        %v1664 = vsel %vm1663, %v1660, %v1662
        %v1665 = vsel %vm1663, %v1658, %v1660
        %v1666 = vsel %vm1663, %v1656, %v1658
        %v1667 = vsel %vm1663, %v1654, %v1656
        %v1668 = vsel %vm1663, %v1652, %v1654
        %v1669 = vsel %vm1663, %v1650, %v1652
        %v1670 = vsel %vm1663, %v1648, %v1650
        %v1671 = vsel %vm1663, %v1662, %v1648
        %vm1672 = vcmp.ne.s32.totalorder %v1621, %v687
        %v1673 = vsel %vm1672, 1, 0
        %v1674 = vlaneseq
        %v1675 = vshrl.u32 %v1674, 7
        %v1676 = vsub.s32 0, %v1675
        %v1677 = vrot.slane %v1673, %v1676
        %v1678 = vlaneseq
        %v1679 = vshrl.u32 %v1678, 7
        %v1680 = vsub.s32 1, %v1679
        %v1681 = vrot.slane %v1673, %v1680
        %v1682 = vlaneseq
        %v1683 = vshrl.u32 %v1682, 7
        %v1684 = vsub.s32 2, %v1683
        %v1685 = vrot.slane %v1673, %v1684
        %v1686 = vlaneseq
        %v1687 = vshrl.u32 %v1686, 7
        %v1688 = vsub.s32 3, %v1687
        %v1689 = vrot.slane %v1673, %v1688
        %v1690 = vlaneseq
        %v1691 = vshrl.u32 %v1690, 7
        %v1692 = vsub.s32 4, %v1691
        %v1693 = vrot.slane %v1673, %v1692
        %v1694 = vlaneseq
        %v1695 = vshrl.u32 %v1694, 7
        %v1696 = vsub.s32 5, %v1695
        %v1697 = vrot.slane %v1673, %v1696
        %v1698 = vlaneseq
        %v1699 = vshrl.u32 %v1698, 7
        %v1700 = vsub.s32 6, %v1699
        %v1701 = vrot.slane %v1673, %v1700
        %v1702 = vlaneseq
        %v1703 = vshrl.u32 %v1702, 7
        %v1704 = vsub.s32 7, %v1703
        %v1705 = vrot.slane %v1673, %v1704
        %vm1706 = vcmp.eq.s32.totalorder %v1677, 1
        %vm1707 = vcmp.eq.s32.totalorder %v1681, 1
        %vm1708 = vcmp.eq.s32.totalorder %v1685, 1
        %vm1709 = vcmp.eq.s32.totalorder %v1689, 1
        %vm1710 = vcmp.eq.s32.totalorder %v1693, 1
        %vm1711 = vcmp.eq.s32.totalorder %v1697, 1
        %vm1712 = vcmp.eq.s32.totalorder %v1701, 1
        %vm1713 = vcmp.eq.s32.totalorder %v1705, 1
        %v1714 = vsel %vm1706, %v1670, %v1646
        %v1715 = vsel %vm1707, %v1669, %v1645
        %v1716 = vsel %vm1708, %v1668, %v1644
        %v1717 = vsel %vm1709, %v1667, %v1643
        %v1718 = vsel %vm1710, %v1666, %v1642
        %v1719 = vsel %vm1711, %v1665, %v1641
        %v1720 = vsel %vm1712, %v1664, %v1640
        %v1721 = vsel %vm1713, %v1671, %v1639
        %v1722 = vadd.f32 %v1536, %v1714
        %v1723 = vadd.f32 %v1537, %v1715
        %v1724 = vadd.f32 %v1538, %v1716
        %v1725 = vadd.f32 %v1539, %v1717
        %v1726 = vadd.f32 %v1540, %v1718
        %v1727 = vadd.f32 %v1541, %v1719
        %v1728 = vadd.f32 %v1542, %v1720
        %v1729 = vadd.f32 %v1543, %v1721
        %v1730 = vadd.f32 %v1722, %v1726
        %v1731 = vadd.f32 %v1723, %v1727
        %v1732 = vadd.f32 %v1724, %v1728
        %v1733 = vadd.f32 %v1725, %v1729
        %vm1734 = vcmp.ge.f32.partialorder %v1730, 0.0
        %vm1735 = vcmp.ge.f32.partialorder %v1731, 0.0
        %vm1736 = vcmp.ge.f32.partialorder %v1732, 0.0
        %vm1737 = vcmp.ge.f32.partialorder %v1733, 0.0
        %v1738 = vmul.f32 %v1730, 0.2
        %v1739 = vmul.f32 %v1731, 0.2
        %v1740 = vmul.f32 %v1732, 0.2
        %v1741 = vmul.f32 %v1733, 0.2
        %v1742 = vsel %vm1734, %v1730, %v1738
        %v1743 = vsel %vm1735, %v1731, %v1739
        %v1744 = vsel %vm1736, %v1732, %v1740
        %v1745 = vsel %vm1737, %v1733, %v1741
        %1746 = vset.pattern.permute.xlu0 3
        %1747 = vperm.xlu0 %1746, %v621
        %v1748 = vpop.permute.xlu0 %1747
        %v1750 = vlaneseq
        %v1751 = vshrl.u32 %v1750, 7
        %v1752 = vsub.s32 3, %v1751
        %v1753 = vrot.slane %v1742, %v1752
        %v1754 = vlaneseq
        %v1755 = vshrl.u32 %v1754, 7
        %v1756 = vsub.s32 3, %v1755
        %v1757 = vrot.slane %v1743, %v1756
        %v1758 = vlaneseq
        %v1759 = vshrl.u32 %v1758, 7
        %v1760 = vsub.s32 3, %v1759
        %v1761 = vrot.slane %v1744, %v1760
        %v1762 = vlaneseq
        %v1763 = vshrl.u32 %v1762, 7
        %v1764 = vsub.s32 3, %v1763
        %v1765 = vrot.slane %v1745, %v1764
        %v1766 = vmul.f32 %v1748, %v1753
        %v1767 = vmul.f32 %v1748, %v1757
        %v1768 = vmul.f32 %v1748, %v1761
        %v1769 = vmul.f32 %v1748, %v1765
        %v1770 = vadd.f32 %v1612, %v1766
        %v1771 = vadd.f32 %v1613, %v1767
        %v1772 = vadd.f32 %v1614, %v1768
        %v1773 = vadd.f32 %v1615, %v1769
        %v1774 = vadd.f32 %v1616, %v1766
        %v1775 = vadd.f32 %v1617, %v1767
        %v1776 = vadd.f32 %v1618, %v1768
        %v1777 = vadd.f32 %v1619, %v1769
        %vm1778 = vcmp.ge.f32.partialorder %v1770, 0.0
        %vm1779 = vcmp.ge.f32.partialorder %v1771, 0.0
        %vm1780 = vcmp.ge.f32.partialorder %v1772, 0.0
        %vm1781 = vcmp.ge.f32.partialorder %v1773, 0.0
        %vm1782 = vcmp.ge.f32.partialorder %v1774, 0.0
        %vm1783 = vcmp.ge.f32.partialorder %v1775, 0.0
        %vm1784 = vcmp.ge.f32.partialorder %v1776, 0.0
        %vm1785 = vcmp.ge.f32.partialorder %v1777, 0.0
        %v1786 = vmul.f32 %v1770, 0.2
        %v1787 = vmul.f32 %v1771, 0.2
        %v1788 = vmul.f32 %v1772, 0.2
        %v1789 = vmul.f32 %v1773, 0.2
        %v1790 = vmul.f32 %v1774, 0.2
        %v1791 = vmul.f32 %v1775, 0.2
        %v1792 = vmul.f32 %v1776, 0.2
        %v1793 = vmul.f32 %v1777, 0.2
        %v1794 = vsel %vm1778, %v1770, %v1786
        %v1795 = vsel %vm1779, %v1771, %v1787
        %v1796 = vsel %vm1780, %v1772, %v1788
        %v1797 = vsel %vm1781, %v1773, %v1789
        %v1798 = vsel %vm1782, %v1774, %v1790
        %v1799 = vsel %vm1783, %v1775, %v1791
        %v1800 = vsel %vm1784, %v1776, %v1792
        %v1801 = vsel %vm1785, %v1777, %v1793
        %1802 = vst [vmem:[%s258] sm:$0xff] %v1794
        %1803 = vst [vmem:[%s258 + $0x8] sm:$0xff] %v1795
        %1804 = vst [vmem:[%s258 + $0x10] sm:$0xff] %v1796
        %1805 = vst [vmem:[%s258 + $0x18] sm:$0xff] %v1797
        %1806 = vst [vmem:[%s258 + $0x20] sm:$0xff] %v1798
        %1807 = vst [vmem:[%s258 + $0x28] sm:$0xff] %v1799
        %1808 = vst [vmem:[%s258 + $0x30] sm:$0xff] %v1800
        %1809 = vst [vmem:[%s258 + $0x38] sm:$0xff] %v1801
        %s1810 = sand.u32 %s156, 1
        %s1811 = scalar_lea.sflag [#allocation4], %s1810
        %s1812 = sand.u32 %s156, 1
        %s1813 = smul.addr %s1812, 64
        %s1814 = scalar_lea.vmem [#allocation5], %s1813
        // Predicated region
        $region45: #{tpu_custom_call.1} parent=39 // pred_check
          %p1815 = pneg %p166
        $region46: #{tpu_custom_call.1} parent=39 // pred_check_branch
          %1817 = sbr.rel (%p1815) target = $region48
        $region47: #{tpu_custom_call.1} parent=39 // pred_region
          %s1818 = smul.u32 8, %s27
          %s1820 = ssub.s32 1024, 1024
          %1821 = vsyncadd %s1811, %s1820
          %s1822 = smul.addr %s26, 8
          %s1823 = sadd.s32 %s1818, %s1822
          %s1824 = smul.addr %s1823, 128
          %s1825 = scalar_lea.hbm %s5, %s1824
          %s1827 = sshll.u32 %s1814, 4
          %s1828 = int_to_ptr.vmem [resolvable:$true] %s1827
          %1830 = dma.vmem_to_hbm [thread:$0]  %s1828, 1024, %s1825, %s1811
        $region48: #{tpu_custom_call.1} parent=39 // pred_fallthru
          _
      $region40: #{tpu_custom_call.1} parent=5 // pred_fallthru
        _
      %p1831 = scmp.le.s32.totalorder 2, %s17
      // Predicated region
      $region49: #{tpu_custom_call.1} parent=5 // pred_check
        %p1832 = pneg %p1831
      $region50: #{tpu_custom_call.1} parent=5 // pred_check_branch
        %1834 = sbr.rel (%p1832) target = $region52
      $region51: #{tpu_custom_call.1} parent=5 // pred_region
        %s1835 = ssub.s32 %s17, 2
        // Predicated region
        $region53: #{tpu_custom_call.1} parent=51 // pred_check
          %p1836 = pneg %p172
        $region54: #{tpu_custom_call.1} parent=51 // pred_check_branch
          %1838 = sbr.rel (%p1836) target = $region56
        $region55: #{tpu_custom_call.1} parent=51 // pred_region
          %s1839 = sand.u32 %s157, 1
          %s1840 = scalar_lea.sflag [#allocation4], %s1839
          %s1841 = sand.u32 %s157, 1
          %s1842 = smul.addr %s1841, 64
          %s1843 = scalar_lea.vmem [#allocation5], %s1842
          %1844 = dma.done %s1840, 1024
        $region56: #{tpu_custom_call.1} parent=51 // pred_fallthru
          _
      $region52: #{tpu_custom_call.1} parent=5 // pred_fallthru
        _
    $region6: #{tpu_custom_call.1} parent=1 // loop_footer
      %s21 = sadd.s32 1, %s17
    $region7: #{tpu_custom_call.1} parent=1 // loop_footer_branch
      %16 = sbr.rel target = $region3
    $region8: #{tpu_custom_call.1} parent=1 // loop_exit
      _
    %1845 = vsyncpa [#allocation3], 1
    %s1846 = scalar_lea.sflag [#allocation3], 1
    %1847 = vsyncpa %s1846, 1
    %1848 = vsyncpa [#allocation4], 1
    %s1849 = scalar_lea.sflag [#allocation4], 1
    %1850 = vsyncpa %s1849, 1

</llo_original>
